<compile_context>
chip_gen: v5e
topology: v5e:2x2
jax: 0.10.0
libtpu: 0.0.40
codegen_flags: <defaults>
</compile_context>

<pallas_src>
import math

import jax
import jax.numpy as jnp
from jax import lax
from jax.experimental import pallas as pl

# ----------------------------- config (small, LaBSE-like) -----------------------------
B = 2        # batch
S = 8        # sequence length
H = 128      # hidden size
NH = 2       # attention heads
DH = H // NH # head dim
F = 256      # FFN inner size
L = 2        # encoder layers
V = 64       # vocab size
NTYPES = 2   # token types
LN_EPS = 1e-12
NORM_EPS = 1e-12
BS = B * S


# ----------------------------- in-kernel helpers -----------------------------
def _layernorm(x, gamma, beta):
    mu = jnp.mean(x, axis=-1, keepdims=True)
    var = jnp.mean((x - mu) ** 2, axis=-1, keepdims=True)
    return (x - mu) * lax.rsqrt(var + LN_EPS) * gamma + beta


def _gelu(x):
    # tanh-approximate GELU (BERT-style); tanh goes to the EUP
    c = math.sqrt(2.0 / math.pi)
    return 0.5 * x * (1.0 + jnp.tanh(c * (x + 0.044715 * x * x * x)))


# ----------------------------- the fused kernel -----------------------------
def fused_forward_kernel(emb_ref, mask_ref, emb_g_ref, emb_b_ref,
                         wqkv_ref, bqkv_ref, wo_ref, bo_ref,
                         g1_ref, be1_ref, w1_ref, bf1_ref,
                         w2_ref, bf2_ref, g2_ref, be2_ref,
                         head_w_ref, head_b_ref, o_ref):
    # ---- prologue: embedding LayerNorm + additive attention bias (computed once) ----
    x = _layernorm(emb_ref[...].reshape(BS, H), emb_g_ref[...], emb_b_ref[...])   # (BS, H) f32
    bias = (1.0 - mask_ref[...]) * (-1e9)      # (B, 1, S); broadcast over query rows
    scale = 1.0 / math.sqrt(DH)

    def layer_body(l, x):
        xb = x.astype(jnp.bfloat16)
        # fused QKV projection: single (BS, H) @ (H, 3H) MXU pass, f32 accumulation
        qkv = jnp.dot(xb, wqkv_ref[l], preferred_element_type=jnp.float32) + bqkv_ref[l]
        q = qkv[:, 0 * H:1 * H].reshape(B, S, H)
        k = qkv[:, 1 * H:2 * H].reshape(B, S, H)
        v = qkv[:, 2 * H:3 * H].reshape(B, S, H)
        wo = wo_ref[l]                          # (H, H) bf16

        attn = jnp.zeros((BS, H), jnp.float32)
        for h in range(NH):                     # static unroll over heads
            lo = h * DH
            qh = q[:, :, lo:lo + DH]            # (B, S, DH)
            kh = k[:, :, lo:lo + DH]
            vh = v[:, :, lo:lo + DH]
            # batched over B, contract the head dim directly -> no kh.T transpose
            s = jnp.einsum('bqd,bkd->bqk', qh, kh,
                           preferred_element_type=jnp.float32) * scale + bias
            s = s - jnp.max(s, axis=-1, keepdims=True)
            p = jnp.exp(s)
            p = p * pl.reciprocal(jnp.sum(p, axis=-1, keepdims=True), approx=True)
            ctx_h = jnp.einsum('bqk,bkd->bqd', p, vh,
                               preferred_element_type=jnp.float32)   # (B, S, DH)
            # fold the per-head slice of the output projection in here: the head
            # contexts never get concatenated along the lane axis.
            attn = attn + jnp.dot(ctx_h.reshape(BS, DH).astype(jnp.bfloat16),
                                  wo[lo:lo + DH, :],
                                  preferred_element_type=jnp.float32)
        attn = attn + bo_ref[l]

        h1 = _layernorm(x + attn, g1_ref[l], be1_ref[l])
        ff = _gelu(jnp.dot(h1.astype(jnp.bfloat16), w1_ref[l],
                           preferred_element_type=jnp.float32) + bf1_ref[l])
        ff = jnp.dot(ff.astype(jnp.bfloat16), w2_ref[l],
                     preferred_element_type=jnp.float32) + bf2_ref[l]
        return _layernorm(h1 + ff, g2_ref[l], be2_ref[l])

    x = lax.fori_loop(0, L, layer_body, x, unroll=True)

    # ---- pooling head: CLS token -> Dense + tanh -> L2 normalize (f32) ----
    cls = x.reshape(B, S, H)[:, 0, :]                                    # (B, H)
    z = jnp.dot(cls.astype(jnp.bfloat16), head_w_ref[...],
                preferred_element_type=jnp.float32) + head_b_ref[...]
    z = jnp.tanh(z)
    ssq = jnp.sum(z * z, axis=-1, keepdims=True)
    o_ref[...] = z * lax.rsqrt(jnp.maximum(ssq, NORM_EPS * NORM_EPS))


def fused_forward(emb, mask_f, p):
    # no grid: the whole (tiny) problem lives in VMEM for a single invocation;
    # ~0.6 MiB of weights + activations fits every TPU generation comfortably.
    args = (emb, mask_f, p["emb_ln_g"], p["emb_ln_b"],
            p["wqkv"], p["bqkv"], p["wo"], p["bo"],
            p["g1"], p["be1"], p["w1"], p["bf1"],
            p["w2"], p["bf2"], p["g2"], p["be2"],
            p["head_w"], p["head_b"])
    return pl.pallas_call(
        fused_forward_kernel,
        out_shape=jax.ShapeDtypeStruct((B, H), jnp.float32),
    )(*args)


# ----------------------------- parameters -----------------------------
def init_params(key):
    keys = iter(jax.random.split(key, 16))

    def nrm(shape, scale=0.02):
        return scale * jax.random.normal(next(keys), shape, dtype=jnp.float32)

    params = {
        "word_emb": nrm((V, H)),
        "pos_emb": nrm((S, H)),
        "type_emb": nrm((NTYPES, H)),
        "emb_ln_g": jnp.ones((1, H), jnp.float32),
        "emb_ln_b": jnp.zeros((1, H), jnp.float32),
        # per-layer weights stacked along a leading L axis; dense matmul weights
        # are stored in bf16 (MXU operands), biases / LayerNorm params stay f32.
        "wqkv": nrm((L, H, 3 * H)).astype(jnp.bfloat16),
        "bqkv": jnp.zeros((L, 1, 3 * H), jnp.float32),
        "wo": nrm((L, H, H)).astype(jnp.bfloat16),
        "bo": jnp.zeros((L, 1, H), jnp.float32),
        "g1": jnp.ones((L, 1, H), jnp.float32),
        "be1": jnp.zeros((L, 1, H), jnp.float32),
        "w1": nrm((L, H, F)).astype(jnp.bfloat16),
        "bf1": jnp.zeros((L, 1, F), jnp.float32),
        "w2": nrm((L, F, H)).astype(jnp.bfloat16),
        "bf2": jnp.zeros((L, 1, H), jnp.float32),
        "g2": jnp.ones((L, 1, H), jnp.float32),
        "be2": jnp.zeros((L, 1, H), jnp.float32),
        "head_w": nrm((H, H)).astype(jnp.bfloat16),
        "head_b": jnp.zeros((1, H), jnp.float32),
    }
    return params


# ----------------------------- forward -----------------------------
@jax.jit
def multilingual_sentence_embedding(params, input_ids, attention_mask, token_type_ids):
    # TODO(synk): tokenization + embedding-table gather stay in plain JAX (glue).
    emb = (params["word_emb"][input_ids]
           + params["pos_emb"][None, :, :]
           + params["type_emb"][token_type_ids])                  # (B, S, H) f32
    mask_f = attention_mask.astype(jnp.float32).reshape(B, 1, S)  # 1.0 keep / 0.0 pad
    return fused_forward(emb, mask_f, params)                     # single Pallas call


# ----------------------------- main -----------------------------
if __name__ == "__main__":
    key = jax.random.PRNGKey(0)
    pkey, dkey = jax.random.split(key)

    params = init_params(pkey)

    input_ids = jax.random.randint(dkey, (B, S), 0, V, dtype=jnp.int32)
    # second sequence has 3 padding tokens at the end
    attention_mask = jnp.array(
        [[1, 1, 1, 1, 1, 1, 1, 1],
         [1, 1, 1, 1, 1, 0, 0, 0]], dtype=jnp.int32)
    token_type_ids = jnp.zeros((B, S), dtype=jnp.int32)

    out = multilingual_sentence_embedding(params, input_ids, attention_mask, token_type_ids)
    out = jax.block_until_ready(out)

    assert out.shape == (B, H) and out.dtype == jnp.float32
    # sentence embeddings are L2-normalized
    assert bool(jnp.all(jnp.abs(jnp.linalg.norm(out, axis=-1) - 1.0) < 1e-3))
    print("KERNEL_OK")
</pallas_src>

<mosaic_0001>
module attributes {stable_mosaic.version = 11 : i64} {
  func.func @fused_forward_kernel(%arg0: memref<2x8x128xf32, #tpu.memory_space<vmem>>, %arg1: memref<2x1x8xf32, #tpu.memory_space<vmem>>, %arg2: memref<1x128xf32, #tpu.memory_space<vmem>>, %arg3: memref<1x128xf32, #tpu.memory_space<vmem>>, %arg4: memref<2x128x384xbf16, #tpu.memory_space<vmem>>, %arg5: memref<2x1x384xf32, #tpu.memory_space<vmem>>, %arg6: memref<2x128x128xbf16, #tpu.memory_space<vmem>>, %arg7: memref<2x1x128xf32, #tpu.memory_space<vmem>>, %arg8: memref<2x1x128xf32, #tpu.memory_space<vmem>>, %arg9: memref<2x1x128xf32, #tpu.memory_space<vmem>>, %arg10: memref<2x128x256xbf16, #tpu.memory_space<vmem>>, %arg11: memref<2x1x256xf32, #tpu.memory_space<vmem>>, %arg12: memref<2x256x128xbf16, #tpu.memory_space<vmem>>, %arg13: memref<2x1x128xf32, #tpu.memory_space<vmem>>, %arg14: memref<2x1x128xf32, #tpu.memory_space<vmem>>, %arg15: memref<2x1x128xf32, #tpu.memory_space<vmem>>, %arg16: memref<128x128xbf16, #tpu.memory_space<vmem>>, %arg17: memref<1x128xf32, #tpu.memory_space<vmem>>, %arg18: memref<2x128xf32, #tpu.memory_space<vmem>>) attributes {dimension_semantics = [], scalar_prefetch = 0 : i64, scratch_operands = 0 : i64, tpu.core_type = #tpu.core_type<tc>} {
    %c0 = arith.constant 0 : index
    %c0_0 = arith.constant 0 : index
    %c0_1 = arith.constant 0 : index
    %0 = vector.load %arg0[%c0, %c0_0, %c0_1] : memref<2x8x128xf32, #tpu.memory_space<vmem>>, vector<2x8x128xf32>
    %1 = vector.shape_cast %0 : vector<2x8x128xf32> to vector<16x128xf32>
    %c0_2 = arith.constant 0 : index
    %c0_3 = arith.constant 0 : index
    %2 = vector.load %arg2[%c0_2, %c0_3] : memref<1x128xf32, #tpu.memory_space<vmem>>, vector<1x128xf32>
    %c0_4 = arith.constant 0 : index
    %c0_5 = arith.constant 0 : index
    %3 = vector.load %arg3[%c0_4, %c0_5] : memref<1x128xf32, #tpu.memory_space<vmem>>, vector<1x128xf32>
    %cst = arith.constant dense<0.000000e+00> : vector<16xf32>
    %4 = vector.multi_reduction <add>, %1, %cst [1] : vector<16x128xf32> to vector<16xf32>
    %5 = vector.shape_cast %4 : vector<16xf32> to vector<16x1xf32>
    %cst_6 = arith.constant 1.280000e+02 : f32
    %6 = vector.broadcast %cst_6 : f32 to vector<16x1xf32>
    %7 = arith.divf %5, %6 : vector<16x1xf32>
    %8 = vector.broadcast %7 : vector<16x1xf32> to vector<16x128xf32>
    %9 = arith.subf %1, %8 : vector<16x128xf32>
    %10 = arith.mulf %9, %9 : vector<16x128xf32>
    %cst_7 = arith.constant dense<0.000000e+00> : vector<16xf32>
    %11 = vector.multi_reduction <add>, %10, %cst_7 [1] : vector<16x128xf32> to vector<16xf32>
    %12 = vector.shape_cast %11 : vector<16xf32> to vector<16x1xf32>
    %cst_8 = arith.constant 1.280000e+02 : f32
    %13 = vector.broadcast %cst_8 : f32 to vector<16x1xf32>
    %14 = arith.divf %12, %13 : vector<16x1xf32>
    %15 = vector.broadcast %7 : vector<16x1xf32> to vector<16x128xf32>
    %16 = arith.subf %1, %15 : vector<16x128xf32>
    %cst_9 = arith.constant 9.99999996E-13 : f32
    %17 = vector.broadcast %cst_9 : f32 to vector<16x1xf32>
    %18 = arith.addf %14, %17 : vector<16x1xf32>
    %19 = math.rsqrt %18 : vector<16x1xf32>
    %20 = vector.broadcast %19 : vector<16x1xf32> to vector<16x128xf32>
    %21 = arith.mulf %16, %20 : vector<16x128xf32>
    %22 = vector.broadcast %2 : vector<1x128xf32> to vector<16x128xf32>
    %23 = arith.mulf %21, %22 : vector<16x128xf32>
    %24 = vector.broadcast %3 : vector<1x128xf32> to vector<16x128xf32>
    %25 = arith.addf %23, %24 : vector<16x128xf32>
    %c0_10 = arith.constant 0 : index
    %c0_11 = arith.constant 0 : index
    %c0_12 = arith.constant 0 : index
    %26 = vector.load %arg1[%c0_10, %c0_11, %c0_12] : memref<2x1x8xf32, #tpu.memory_space<vmem>>, vector<2x1x8xf32>
    %cst_13 = arith.constant 1.000000e+00 : f32
    %27 = vector.broadcast %cst_13 : f32 to vector<2x1x8xf32>
    %28 = arith.subf %27, %26 : vector<2x1x8xf32>
    %cst_14 = arith.constant -1.000000e+09 : f32
    %29 = vector.broadcast %cst_14 : f32 to vector<2x1x8xf32>
    %30 = arith.mulf %28, %29 : vector<2x1x8xf32>
    %c0_i32 = arith.constant 0 : i32
    %31 = arith.truncf %25 : vector<16x128xf32> to vector<16x128xbf16>
    %32 = arith.index_cast %c0_i32 : i32 to index
    %c0_15 = arith.constant 0 : index
    %c0_16 = arith.constant 0 : index
    %33 = vector.load %arg4[%32, %c0_15, %c0_16] : memref<2x128x384xbf16, #tpu.memory_space<vmem>>, vector<1x128x384xbf16>
    %34 = vector.shape_cast %33 : vector<1x128x384xbf16> to vector<128x384xbf16>
    %cst_17 = arith.constant dense<0.000000e+00> : vector<16x384xf32>
    %35 = tpu.matmul %31, %34, %cst_17 {dimension_numbers = #tpu.dot_dimension_numbers<[1], [0], [0], [1], [0, 0, 1, 1], [], []>} : vector<16x128xbf16>, vector<128x384xbf16>, vector<16x384xf32> -> vector<16x384xf32>
    %36 = arith.index_cast %c0_i32 : i32 to index
    %c0_18 = arith.constant 0 : index
    %c0_19 = arith.constant 0 : index
    %37 = vector.load %arg5[%36, %c0_18, %c0_19] : memref<2x1x384xf32, #tpu.memory_space<vmem>>, vector<1x1x384xf32>
    %38 = vector.shape_cast %37 : vector<1x1x384xf32> to vector<1x384xf32>
    %39 = vector.broadcast %38 : vector<1x384xf32> to vector<16x384xf32>
    %40 = arith.addf %35, %39 : vector<16x384xf32>
    %41 = vector.extract_strided_slice %40 {offsets = [0, 0], sizes = [16, 128], strides = [1, 1]} : vector<16x384xf32> to vector<16x128xf32>
    %42 = vector.shape_cast %41 : vector<16x128xf32> to vector<2x8x128xf32>
    %43 = vector.extract_strided_slice %40 {offsets = [0, 128], sizes = [16, 128], strides = [1, 1]} : vector<16x384xf32> to vector<16x128xf32>
    %44 = vector.shape_cast %43 : vector<16x128xf32> to vector<2x8x128xf32>
    %45 = vector.extract_strided_slice %40 {offsets = [0, 256], sizes = [16, 128], strides = [1, 1]} : vector<16x384xf32> to vector<16x128xf32>
    %46 = vector.shape_cast %45 : vector<16x128xf32> to vector<2x8x128xf32>
    %47 = arith.index_cast %c0_i32 : i32 to index
    %c0_20 = arith.constant 0 : index
    %c0_21 = arith.constant 0 : index
    %48 = vector.load %arg6[%47, %c0_20, %c0_21] : memref<2x128x128xbf16, #tpu.memory_space<vmem>>, vector<1x128x128xbf16>
    %49 = vector.shape_cast %48 : vector<1x128x128xbf16> to vector<128x128xbf16>
    %cst_22 = arith.constant 0.000000e+00 : f32
    %50 = vector.broadcast %cst_22 : f32 to vector<16x128xf32>
    %51 = vector.extract_strided_slice %42 {offsets = [0, 0, 0], sizes = [2, 8, 64], strides = [1, 1, 1]} : vector<2x8x128xf32> to vector<2x8x64xf32>
    %52 = vector.extract_strided_slice %44 {offsets = [0, 0, 0], sizes = [2, 8, 64], strides = [1, 1, 1]} : vector<2x8x128xf32> to vector<2x8x64xf32>
    %53 = vector.extract_strided_slice %46 {offsets = [0, 0, 0], sizes = [2, 8, 64], strides = [1, 1, 1]} : vector<2x8x128xf32> to vector<2x8x64xf32>
    "tpu.trace_start"() <{level = 10 : i32, message = "bqd,bkd->bqk"}> : () -> ()
    %cst_23 = arith.constant dense<0.000000e+00> : vector<2x8x8xf32>
    %54 = tpu.matmul %51, %52, %cst_23 {dimension_numbers = #tpu.dot_dimension_numbers<[2], [2], [1], [1], [0, 0, 0, 1, 1, 1], [0], [0]>} : vector<2x8x64xf32>, vector<2x8x64xf32>, vector<2x8x8xf32> -> vector<2x8x8xf32>
    "tpu.trace_stop"() : () -> ()
    %cst_24 = arith.constant 1.250000e-01 : f32
    %55 = vector.broadcast %cst_24 : f32 to vector<2x8x8xf32>
    %56 = arith.mulf %54, %55 : vector<2x8x8xf32>
    %57 = vector.broadcast %30 : vector<2x1x8xf32> to vector<2x8x8xf32>
    %58 = arith.addf %56, %57 : vector<2x8x8xf32>
    %cst_25 = arith.constant dense<0xFF800000> : vector<2x8xf32>
    %59 = vector.multi_reduction <maximumf>, %58, %cst_25 [2] : vector<2x8x8xf32> to vector<2x8xf32>
    %60 = vector.shape_cast %59 : vector<2x8xf32> to vector<2x8x1xf32>
    %61 = vector.broadcast %60 : vector<2x8x1xf32> to vector<2x8x8xf32>
    %62 = arith.subf %58, %61 : vector<2x8x8xf32>
    %63 = math.exp %62 : vector<2x8x8xf32>
    %cst_26 = arith.constant dense<0.000000e+00> : vector<2x8xf32>
    %64 = vector.multi_reduction <add>, %63, %cst_26 [2] : vector<2x8x8xf32> to vector<2x8xf32>
    %65 = vector.shape_cast %64 : vector<2x8xf32> to vector<2x8x1xf32>
    %66 = tpu.reciprocal %65 {approx = true} : vector<2x8x1xf32> -> vector<2x8x1xf32>
    %67 = vector.broadcast %66 : vector<2x8x1xf32> to vector<2x8x8xf32>
    %68 = arith.mulf %63, %67 : vector<2x8x8xf32>
    "tpu.trace_start"() <{level = 10 : i32, message = "bqk,bkd->bqd"}> : () -> ()
    %cst_27 = arith.constant dense<0.000000e+00> : vector<2x8x64xf32>
    %69 = tpu.matmul %68, %53, %cst_27 {dimension_numbers = #tpu.dot_dimension_numbers<[2], [1], [1], [2], [0, 0, 0, 1, 1, 2], [0], [0]>} : vector<2x8x8xf32>, vector<2x8x64xf32>, vector<2x8x64xf32> -> vector<2x8x64xf32>
    "tpu.trace_stop"() : () -> ()
    %70 = vector.shape_cast %69 : vector<2x8x64xf32> to vector<16x64xf32>
    %71 = arith.truncf %70 : vector<16x64xf32> to vector<16x64xbf16>
    %72 = vector.extract_strided_slice %49 {offsets = [0, 0], sizes = [64, 128], strides = [1, 1]} : vector<128x128xbf16> to vector<64x128xbf16>
    %cst_28 = arith.constant dense<0.000000e+00> : vector<16x128xf32>
    %73 = tpu.matmul %71, %72, %cst_28 {dimension_numbers = #tpu.dot_dimension_numbers<[1], [0], [0], [1], [0, 0, 1, 1], [], []>} : vector<16x64xbf16>, vector<64x128xbf16>, vector<16x128xf32> -> vector<16x128xf32>
    %74 = arith.addf %50, %73 : vector<16x128xf32>
    %75 = vector.extract_strided_slice %42 {offsets = [0, 0, 64], sizes = [2, 8, 64], strides = [1, 1, 1]} : vector<2x8x128xf32> to vector<2x8x64xf32>
    %76 = vector.extract_strided_slice %44 {offsets = [0, 0, 64], sizes = [2, 8, 64], strides = [1, 1, 1]} : vector<2x8x128xf32> to vector<2x8x64xf32>
    %77 = vector.extract_strided_slice %46 {offsets = [0, 0, 64], sizes = [2, 8, 64], strides = [1, 1, 1]} : vector<2x8x128xf32> to vector<2x8x64xf32>
    "tpu.trace_start"() <{level = 10 : i32, message = "bqd,bkd->bqk"}> : () -> ()
    %cst_29 = arith.constant dense<0.000000e+00> : vector<2x8x8xf32>
    %78 = tpu.matmul %75, %76, %cst_29 {dimension_numbers = #tpu.dot_dimension_numbers<[2], [2], [1], [1], [0, 0, 0, 1, 1, 1], [0], [0]>} : vector<2x8x64xf32>, vector<2x8x64xf32>, vector<2x8x8xf32> -> vector<2x8x8xf32>
    "tpu.trace_stop"() : () -> ()
    %cst_30 = arith.constant 1.250000e-01 : f32
    %79 = vector.broadcast %cst_30 : f32 to vector<2x8x8xf32>
    %80 = arith.mulf %78, %79 : vector<2x8x8xf32>
    %81 = vector.broadcast %30 : vector<2x1x8xf32> to vector<2x8x8xf32>
    %82 = arith.addf %80, %81 : vector<2x8x8xf32>
    %cst_31 = arith.constant dense<0xFF800000> : vector<2x8xf32>
    %83 = vector.multi_reduction <maximumf>, %82, %cst_31 [2] : vector<2x8x8xf32> to vector<2x8xf32>
    %84 = vector.shape_cast %83 : vector<2x8xf32> to vector<2x8x1xf32>
    %85 = vector.broadcast %84 : vector<2x8x1xf32> to vector<2x8x8xf32>
    %86 = arith.subf %82, %85 : vector<2x8x8xf32>
    %87 = math.exp %86 : vector<2x8x8xf32>
    %cst_32 = arith.constant dense<0.000000e+00> : vector<2x8xf32>
    %88 = vector.multi_reduction <add>, %87, %cst_32 [2] : vector<2x8x8xf32> to vector<2x8xf32>
    %89 = vector.shape_cast %88 : vector<2x8xf32> to vector<2x8x1xf32>
    %90 = tpu.reciprocal %89 {approx = true} : vector<2x8x1xf32> -> vector<2x8x1xf32>
    %91 = vector.broadcast %90 : vector<2x8x1xf32> to vector<2x8x8xf32>
    %92 = arith.mulf %87, %91 : vector<2x8x8xf32>
    "tpu.trace_start"() <{level = 10 : i32, message = "bqk,bkd->bqd"}> : () -> ()
    %cst_33 = arith.constant dense<0.000000e+00> : vector<2x8x64xf32>
    %93 = tpu.matmul %92, %77, %cst_33 {dimension_numbers = #tpu.dot_dimension_numbers<[2], [1], [1], [2], [0, 0, 0, 1, 1, 2], [0], [0]>} : vector<2x8x8xf32>, vector<2x8x64xf32>, vector<2x8x64xf32> -> vector<2x8x64xf32>
    "tpu.trace_stop"() : () -> ()
    %94 = vector.shape_cast %93 : vector<2x8x64xf32> to vector<16x64xf32>
    %95 = arith.truncf %94 : vector<16x64xf32> to vector<16x64xbf16>
    %96 = vector.extract_strided_slice %49 {offsets = [64, 0], sizes = [64, 128], strides = [1, 1]} : vector<128x128xbf16> to vector<64x128xbf16>
    %cst_34 = arith.constant dense<0.000000e+00> : vector<16x128xf32>
    %97 = tpu.matmul %95, %96, %cst_34 {dimension_numbers = #tpu.dot_dimension_numbers<[1], [0], [0], [1], [0, 0, 1, 1], [], []>} : vector<16x64xbf16>, vector<64x128xbf16>, vector<16x128xf32> -> vector<16x128xf32>
    %98 = arith.addf %74, %97 : vector<16x128xf32>
    %99 = arith.index_cast %c0_i32 : i32 to index
    %c0_35 = arith.constant 0 : index
    %c0_36 = arith.constant 0 : index
    %100 = vector.load %arg7[%99, %c0_35, %c0_36] : memref<2x1x128xf32, #tpu.memory_space<vmem>>, vector<1x1x128xf32>
    %101 = vector.shape_cast %100 : vector<1x1x128xf32> to vector<1x128xf32>
    %102 = vector.broadcast %101 : vector<1x128xf32> to vector<16x128xf32>
    %103 = arith.addf %98, %102 : vector<16x128xf32>
    %104 = arith.addf %25, %103 : vector<16x128xf32>
    %105 = arith.index_cast %c0_i32 : i32 to index
    %c0_37 = arith.constant 0 : index
    %c0_38 = arith.constant 0 : index
    %106 = vector.load %arg8[%105, %c0_37, %c0_38] : memref<2x1x128xf32, #tpu.memory_space<vmem>>, vector<1x1x128xf32>
    %107 = vector.shape_cast %106 : vector<1x1x128xf32> to vector<1x128xf32>
    %108 = arith.index_cast %c0_i32 : i32 to index
    %c0_39 = arith.constant 0 : index
    %c0_40 = arith.constant 0 : index
    %109 = vector.load %arg9[%108, %c0_39, %c0_40] : memref<2x1x128xf32, #tpu.memory_space<vmem>>, vector<1x1x128xf32>
    %110 = vector.shape_cast %109 : vector<1x1x128xf32> to vector<1x128xf32>
    %cst_41 = arith.constant dense<0.000000e+00> : vector<16xf32>
    %111 = vector.multi_reduction <add>, %104, %cst_41 [1] : vector<16x128xf32> to vector<16xf32>
    %112 = vector.shape_cast %111 : vector<16xf32> to vector<16x1xf32>
    %cst_42 = arith.constant 1.280000e+02 : f32
    %113 = vector.broadcast %cst_42 : f32 to vector<16x1xf32>
    %114 = arith.divf %112, %113 : vector<16x1xf32>
    %115 = vector.broadcast %114 : vector<16x1xf32> to vector<16x128xf32>
    %116 = arith.subf %104, %115 : vector<16x128xf32>
    %117 = arith.mulf %116, %116 : vector<16x128xf32>
    %cst_43 = arith.constant dense<0.000000e+00> : vector<16xf32>
    %118 = vector.multi_reduction <add>, %117, %cst_43 [1] : vector<16x128xf32> to vector<16xf32>
    %119 = vector.shape_cast %118 : vector<16xf32> to vector<16x1xf32>
    %cst_44 = arith.constant 1.280000e+02 : f32
    %120 = vector.broadcast %cst_44 : f32 to vector<16x1xf32>
    %121 = arith.divf %119, %120 : vector<16x1xf32>
    %122 = vector.broadcast %114 : vector<16x1xf32> to vector<16x128xf32>
    %123 = arith.subf %104, %122 : vector<16x128xf32>
    %cst_45 = arith.constant 9.99999996E-13 : f32
    %124 = vector.broadcast %cst_45 : f32 to vector<16x1xf32>
    %125 = arith.addf %121, %124 : vector<16x1xf32>
    %126 = math.rsqrt %125 : vector<16x1xf32>
    %127 = vector.broadcast %126 : vector<16x1xf32> to vector<16x128xf32>
    %128 = arith.mulf %123, %127 : vector<16x128xf32>
    %129 = vector.broadcast %107 : vector<1x128xf32> to vector<16x128xf32>
    %130 = arith.mulf %128, %129 : vector<16x128xf32>
    %131 = vector.broadcast %110 : vector<1x128xf32> to vector<16x128xf32>
    %132 = arith.addf %130, %131 : vector<16x128xf32>
    %133 = arith.truncf %132 : vector<16x128xf32> to vector<16x128xbf16>
    %134 = arith.index_cast %c0_i32 : i32 to index
    %c0_46 = arith.constant 0 : index
    %c0_47 = arith.constant 0 : index
    %135 = vector.load %arg10[%134, %c0_46, %c0_47] : memref<2x128x256xbf16, #tpu.memory_space<vmem>>, vector<1x128x256xbf16>
    %136 = vector.shape_cast %135 : vector<1x128x256xbf16> to vector<128x256xbf16>
    %cst_48 = arith.constant dense<0.000000e+00> : vector<16x256xf32>
    %137 = tpu.matmul %133, %136, %cst_48 {dimension_numbers = #tpu.dot_dimension_numbers<[1], [0], [0], [1], [0, 0, 1, 1], [], []>} : vector<16x128xbf16>, vector<128x256xbf16>, vector<16x256xf32> -> vector<16x256xf32>
    %138 = arith.index_cast %c0_i32 : i32 to index
    %c0_49 = arith.constant 0 : index
    %c0_50 = arith.constant 0 : index
    %139 = vector.load %arg11[%138, %c0_49, %c0_50] : memref<2x1x256xf32, #tpu.memory_space<vmem>>, vector<1x1x256xf32>
    %140 = vector.shape_cast %139 : vector<1x1x256xf32> to vector<1x256xf32>
    %141 = vector.broadcast %140 : vector<1x256xf32> to vector<16x256xf32>
    %142 = arith.addf %137, %141 : vector<16x256xf32>
    %cst_51 = arith.constant 5.000000e-01 : f32
    %143 = vector.broadcast %cst_51 : f32 to vector<16x256xf32>
    %144 = arith.mulf %143, %142 : vector<16x256xf32>
    %cst_52 = arith.constant 4.471500e-02 : f32
    %145 = vector.broadcast %cst_52 : f32 to vector<16x256xf32>
    %146 = arith.mulf %145, %142 : vector<16x256xf32>
    %147 = arith.mulf %146, %142 : vector<16x256xf32>
    %148 = arith.mulf %147, %142 : vector<16x256xf32>
    %149 = arith.addf %142, %148 : vector<16x256xf32>
    %cst_53 = arith.constant 0.797884583 : f32
    %150 = vector.broadcast %cst_53 : f32 to vector<16x256xf32>
    %151 = arith.mulf %150, %149 : vector<16x256xf32>
    %152 = math.tanh %151 : vector<16x256xf32>
    %cst_54 = arith.constant 1.000000e+00 : f32
    %153 = vector.broadcast %cst_54 : f32 to vector<16x256xf32>
    %154 = arith.addf %153, %152 : vector<16x256xf32>
    %155 = arith.mulf %144, %154 : vector<16x256xf32>
    %156 = arith.truncf %155 : vector<16x256xf32> to vector<16x256xbf16>
    %157 = arith.index_cast %c0_i32 : i32 to index
    %c0_55 = arith.constant 0 : index
    %c0_56 = arith.constant 0 : index
    %158 = vector.load %arg12[%157, %c0_55, %c0_56] : memref<2x256x128xbf16, #tpu.memory_space<vmem>>, vector<1x256x128xbf16>
    %159 = vector.shape_cast %158 : vector<1x256x128xbf16> to vector<256x128xbf16>
    %cst_57 = arith.constant dense<0.000000e+00> : vector<16x128xf32>
    %160 = tpu.matmul %156, %159, %cst_57 {dimension_numbers = #tpu.dot_dimension_numbers<[1], [0], [0], [1], [0, 0, 1, 1], [], []>} : vector<16x256xbf16>, vector<256x128xbf16>, vector<16x128xf32> -> vector<16x128xf32>
    %161 = arith.index_cast %c0_i32 : i32 to index
    %c0_58 = arith.constant 0 : index
    %c0_59 = arith.constant 0 : index
    %162 = vector.load %arg13[%161, %c0_58, %c0_59] : memref<2x1x128xf32, #tpu.memory_space<vmem>>, vector<1x1x128xf32>
    %163 = vector.shape_cast %162 : vector<1x1x128xf32> to vector<1x128xf32>
    %164 = vector.broadcast %163 : vector<1x128xf32> to vector<16x128xf32>
    %165 = arith.addf %160, %164 : vector<16x128xf32>
    %166 = arith.addf %132, %165 : vector<16x128xf32>
    %167 = arith.index_cast %c0_i32 : i32 to index
    %c0_60 = arith.constant 0 : index
    %c0_61 = arith.constant 0 : index
    %168 = vector.load %arg14[%167, %c0_60, %c0_61] : memref<2x1x128xf32, #tpu.memory_space<vmem>>, vector<1x1x128xf32>
    %169 = vector.shape_cast %168 : vector<1x1x128xf32> to vector<1x128xf32>
    %170 = arith.index_cast %c0_i32 : i32 to index
    %c0_62 = arith.constant 0 : index
    %c0_63 = arith.constant 0 : index
    %171 = vector.load %arg15[%170, %c0_62, %c0_63] : memref<2x1x128xf32, #tpu.memory_space<vmem>>, vector<1x1x128xf32>
    %172 = vector.shape_cast %171 : vector<1x1x128xf32> to vector<1x128xf32>
    %cst_64 = arith.constant dense<0.000000e+00> : vector<16xf32>
    %173 = vector.multi_reduction <add>, %166, %cst_64 [1] : vector<16x128xf32> to vector<16xf32>
    %174 = vector.shape_cast %173 : vector<16xf32> to vector<16x1xf32>
    %cst_65 = arith.constant 1.280000e+02 : f32
    %175 = vector.broadcast %cst_65 : f32 to vector<16x1xf32>
    %176 = arith.divf %174, %175 : vector<16x1xf32>
    %177 = vector.broadcast %176 : vector<16x1xf32> to vector<16x128xf32>
    %178 = arith.subf %166, %177 : vector<16x128xf32>
    %179 = arith.mulf %178, %178 : vector<16x128xf32>
    %cst_66 = arith.constant dense<0.000000e+00> : vector<16xf32>
    %180 = vector.multi_reduction <add>, %179, %cst_66 [1] : vector<16x128xf32> to vector<16xf32>
    %181 = vector.shape_cast %180 : vector<16xf32> to vector<16x1xf32>
    %cst_67 = arith.constant 1.280000e+02 : f32
    %182 = vector.broadcast %cst_67 : f32 to vector<16x1xf32>
    %183 = arith.divf %181, %182 : vector<16x1xf32>
    %184 = vector.broadcast %176 : vector<16x1xf32> to vector<16x128xf32>
    %185 = arith.subf %166, %184 : vector<16x128xf32>
    %cst_68 = arith.constant 9.99999996E-13 : f32
    %186 = vector.broadcast %cst_68 : f32 to vector<16x1xf32>
    %187 = arith.addf %183, %186 : vector<16x1xf32>
    %188 = math.rsqrt %187 : vector<16x1xf32>
    %189 = vector.broadcast %188 : vector<16x1xf32> to vector<16x128xf32>
    %190 = arith.mulf %185, %189 : vector<16x128xf32>
    %191 = vector.broadcast %169 : vector<1x128xf32> to vector<16x128xf32>
    %192 = arith.mulf %190, %191 : vector<16x128xf32>
    %193 = vector.broadcast %172 : vector<1x128xf32> to vector<16x128xf32>
    %194 = arith.addf %192, %193 : vector<16x128xf32>
    %c1_i32 = arith.constant 1 : i32
    %195 = arith.truncf %194 : vector<16x128xf32> to vector<16x128xbf16>
    %196 = arith.index_cast %c1_i32 : i32 to index
    %c0_69 = arith.constant 0 : index
    %c0_70 = arith.constant 0 : index
    %197 = vector.load %arg4[%196, %c0_69, %c0_70] : memref<2x128x384xbf16, #tpu.memory_space<vmem>>, vector<1x128x384xbf16>
    %198 = vector.shape_cast %197 : vector<1x128x384xbf16> to vector<128x384xbf16>
    %cst_71 = arith.constant dense<0.000000e+00> : vector<16x384xf32>
    %199 = tpu.matmul %195, %198, %cst_71 {dimension_numbers = #tpu.dot_dimension_numbers<[1], [0], [0], [1], [0, 0, 1, 1], [], []>} : vector<16x128xbf16>, vector<128x384xbf16>, vector<16x384xf32> -> vector<16x384xf32>
    %200 = arith.index_cast %c1_i32 : i32 to index
    %c0_72 = arith.constant 0 : index
    %c0_73 = arith.constant 0 : index
    %201 = vector.load %arg5[%200, %c0_72, %c0_73] : memref<2x1x384xf32, #tpu.memory_space<vmem>>, vector<1x1x384xf32>
    %202 = vector.shape_cast %201 : vector<1x1x384xf32> to vector<1x384xf32>
    %203 = vector.broadcast %202 : vector<1x384xf32> to vector<16x384xf32>
    %204 = arith.addf %199, %203 : vector<16x384xf32>
    %205 = vector.extract_strided_slice %204 {offsets = [0, 0], sizes = [16, 128], strides = [1, 1]} : vector<16x384xf32> to vector<16x128xf32>
    %206 = vector.shape_cast %205 : vector<16x128xf32> to vector<2x8x128xf32>
    %207 = vector.extract_strided_slice %204 {offsets = [0, 128], sizes = [16, 128], strides = [1, 1]} : vector<16x384xf32> to vector<16x128xf32>
    %208 = vector.shape_cast %207 : vector<16x128xf32> to vector<2x8x128xf32>
    %209 = vector.extract_strided_slice %204 {offsets = [0, 256], sizes = [16, 128], strides = [1, 1]} : vector<16x384xf32> to vector<16x128xf32>
    %210 = vector.shape_cast %209 : vector<16x128xf32> to vector<2x8x128xf32>
    %211 = arith.index_cast %c1_i32 : i32 to index
    %c0_74 = arith.constant 0 : index
    %c0_75 = arith.constant 0 : index
    %212 = vector.load %arg6[%211, %c0_74, %c0_75] : memref<2x128x128xbf16, #tpu.memory_space<vmem>>, vector<1x128x128xbf16>
    %213 = vector.shape_cast %212 : vector<1x128x128xbf16> to vector<128x128xbf16>
    %cst_76 = arith.constant 0.000000e+00 : f32
    %214 = vector.broadcast %cst_76 : f32 to vector<16x128xf32>
    %215 = vector.extract_strided_slice %206 {offsets = [0, 0, 0], sizes = [2, 8, 64], strides = [1, 1, 1]} : vector<2x8x128xf32> to vector<2x8x64xf32>
    %216 = vector.extract_strided_slice %208 {offsets = [0, 0, 0], sizes = [2, 8, 64], strides = [1, 1, 1]} : vector<2x8x128xf32> to vector<2x8x64xf32>
    %217 = vector.extract_strided_slice %210 {offsets = [0, 0, 0], sizes = [2, 8, 64], strides = [1, 1, 1]} : vector<2x8x128xf32> to vector<2x8x64xf32>
    "tpu.trace_start"() <{level = 10 : i32, message = "bqd,bkd->bqk"}> : () -> ()
    %cst_77 = arith.constant dense<0.000000e+00> : vector<2x8x8xf32>
    %218 = tpu.matmul %215, %216, %cst_77 {dimension_numbers = #tpu.dot_dimension_numbers<[2], [2], [1], [1], [0, 0, 0, 1, 1, 1], [0], [0]>} : vector<2x8x64xf32>, vector<2x8x64xf32>, vector<2x8x8xf32> -> vector<2x8x8xf32>
    "tpu.trace_stop"() : () -> ()
    %cst_78 = arith.constant 1.250000e-01 : f32
    %219 = vector.broadcast %cst_78 : f32 to vector<2x8x8xf32>
    %220 = arith.mulf %218, %219 : vector<2x8x8xf32>
    %221 = vector.broadcast %30 : vector<2x1x8xf32> to vector<2x8x8xf32>
    %222 = arith.addf %220, %221 : vector<2x8x8xf32>
    %cst_79 = arith.constant dense<0xFF800000> : vector<2x8xf32>
    %223 = vector.multi_reduction <maximumf>, %222, %cst_79 [2] : vector<2x8x8xf32> to vector<2x8xf32>
    %224 = vector.shape_cast %223 : vector<2x8xf32> to vector<2x8x1xf32>
    %225 = vector.broadcast %224 : vector<2x8x1xf32> to vector<2x8x8xf32>
    %226 = arith.subf %222, %225 : vector<2x8x8xf32>
    %227 = math.exp %226 : vector<2x8x8xf32>
    %cst_80 = arith.constant dense<0.000000e+00> : vector<2x8xf32>
    %228 = vector.multi_reduction <add>, %227, %cst_80 [2] : vector<2x8x8xf32> to vector<2x8xf32>
    %229 = vector.shape_cast %228 : vector<2x8xf32> to vector<2x8x1xf32>
    %230 = tpu.reciprocal %229 {approx = true} : vector<2x8x1xf32> -> vector<2x8x1xf32>
    %231 = vector.broadcast %230 : vector<2x8x1xf32> to vector<2x8x8xf32>
    %232 = arith.mulf %227, %231 : vector<2x8x8xf32>
    "tpu.trace_start"() <{level = 10 : i32, message = "bqk,bkd->bqd"}> : () -> ()
    %cst_81 = arith.constant dense<0.000000e+00> : vector<2x8x64xf32>
    %233 = tpu.matmul %232, %217, %cst_81 {dimension_numbers = #tpu.dot_dimension_numbers<[2], [1], [1], [2], [0, 0, 0, 1, 1, 2], [0], [0]>} : vector<2x8x8xf32>, vector<2x8x64xf32>, vector<2x8x64xf32> -> vector<2x8x64xf32>
    "tpu.trace_stop"() : () -> ()
    %234 = vector.shape_cast %233 : vector<2x8x64xf32> to vector<16x64xf32>
    %235 = arith.truncf %234 : vector<16x64xf32> to vector<16x64xbf16>
    %236 = vector.extract_strided_slice %213 {offsets = [0, 0], sizes = [64, 128], strides = [1, 1]} : vector<128x128xbf16> to vector<64x128xbf16>
    %cst_82 = arith.constant dense<0.000000e+00> : vector<16x128xf32>
    %237 = tpu.matmul %235, %236, %cst_82 {dimension_numbers = #tpu.dot_dimension_numbers<[1], [0], [0], [1], [0, 0, 1, 1], [], []>} : vector<16x64xbf16>, vector<64x128xbf16>, vector<16x128xf32> -> vector<16x128xf32>
    %238 = arith.addf %214, %237 : vector<16x128xf32>
    %239 = vector.extract_strided_slice %206 {offsets = [0, 0, 64], sizes = [2, 8, 64], strides = [1, 1, 1]} : vector<2x8x128xf32> to vector<2x8x64xf32>
    %240 = vector.extract_strided_slice %208 {offsets = [0, 0, 64], sizes = [2, 8, 64], strides = [1, 1, 1]} : vector<2x8x128xf32> to vector<2x8x64xf32>
    %241 = vector.extract_strided_slice %210 {offsets = [0, 0, 64], sizes = [2, 8, 64], strides = [1, 1, 1]} : vector<2x8x128xf32> to vector<2x8x64xf32>
    "tpu.trace_start"() <{level = 10 : i32, message = "bqd,bkd->bqk"}> : () -> ()
    %cst_83 = arith.constant dense<0.000000e+00> : vector<2x8x8xf32>
    %242 = tpu.matmul %239, %240, %cst_83 {dimension_numbers = #tpu.dot_dimension_numbers<[2], [2], [1], [1], [0, 0, 0, 1, 1, 1], [0], [0]>} : vector<2x8x64xf32>, vector<2x8x64xf32>, vector<2x8x8xf32> -> vector<2x8x8xf32>
    "tpu.trace_stop"() : () -> ()
    %cst_84 = arith.constant 1.250000e-01 : f32
    %243 = vector.broadcast %cst_84 : f32 to vector<2x8x8xf32>
    %244 = arith.mulf %242, %243 : vector<2x8x8xf32>
    %245 = vector.broadcast %30 : vector<2x1x8xf32> to vector<2x8x8xf32>
    %246 = arith.addf %244, %245 : vector<2x8x8xf32>
    %cst_85 = arith.constant dense<0xFF800000> : vector<2x8xf32>
    %247 = vector.multi_reduction <maximumf>, %246, %cst_85 [2] : vector<2x8x8xf32> to vector<2x8xf32>
    %248 = vector.shape_cast %247 : vector<2x8xf32> to vector<2x8x1xf32>
    %249 = vector.broadcast %248 : vector<2x8x1xf32> to vector<2x8x8xf32>
    %250 = arith.subf %246, %249 : vector<2x8x8xf32>
    %251 = math.exp %250 : vector<2x8x8xf32>
    %cst_86 = arith.constant dense<0.000000e+00> : vector<2x8xf32>
    %252 = vector.multi_reduction <add>, %251, %cst_86 [2] : vector<2x8x8xf32> to vector<2x8xf32>
    %253 = vector.shape_cast %252 : vector<2x8xf32> to vector<2x8x1xf32>
    %254 = tpu.reciprocal %253 {approx = true} : vector<2x8x1xf32> -> vector<2x8x1xf32>
    %255 = vector.broadcast %254 : vector<2x8x1xf32> to vector<2x8x8xf32>
    %256 = arith.mulf %251, %255 : vector<2x8x8xf32>
    "tpu.trace_start"() <{level = 10 : i32, message = "bqk,bkd->bqd"}> : () -> ()
    %cst_87 = arith.constant dense<0.000000e+00> : vector<2x8x64xf32>
    %257 = tpu.matmul %256, %241, %cst_87 {dimension_numbers = #tpu.dot_dimension_numbers<[2], [1], [1], [2], [0, 0, 0, 1, 1, 2], [0], [0]>} : vector<2x8x8xf32>, vector<2x8x64xf32>, vector<2x8x64xf32> -> vector<2x8x64xf32>
    "tpu.trace_stop"() : () -> ()
    %258 = vector.shape_cast %257 : vector<2x8x64xf32> to vector<16x64xf32>
    %259 = arith.truncf %258 : vector<16x64xf32> to vector<16x64xbf16>
    %260 = vector.extract_strided_slice %213 {offsets = [64, 0], sizes = [64, 128], strides = [1, 1]} : vector<128x128xbf16> to vector<64x128xbf16>
    %cst_88 = arith.constant dense<0.000000e+00> : vector<16x128xf32>
    %261 = tpu.matmul %259, %260, %cst_88 {dimension_numbers = #tpu.dot_dimension_numbers<[1], [0], [0], [1], [0, 0, 1, 1], [], []>} : vector<16x64xbf16>, vector<64x128xbf16>, vector<16x128xf32> -> vector<16x128xf32>
    %262 = arith.addf %238, %261 : vector<16x128xf32>
    %263 = arith.index_cast %c1_i32 : i32 to index
    %c0_89 = arith.constant 0 : index
    %c0_90 = arith.constant 0 : index
    %264 = vector.load %arg7[%263, %c0_89, %c0_90] : memref<2x1x128xf32, #tpu.memory_space<vmem>>, vector<1x1x128xf32>
    %265 = vector.shape_cast %264 : vector<1x1x128xf32> to vector<1x128xf32>
    %266 = vector.broadcast %265 : vector<1x128xf32> to vector<16x128xf32>
    %267 = arith.addf %262, %266 : vector<16x128xf32>
    %268 = arith.addf %194, %267 : vector<16x128xf32>
    %269 = arith.index_cast %c1_i32 : i32 to index
    %c0_91 = arith.constant 0 : index
    %c0_92 = arith.constant 0 : index
    %270 = vector.load %arg8[%269, %c0_91, %c0_92] : memref<2x1x128xf32, #tpu.memory_space<vmem>>, vector<1x1x128xf32>
    %271 = vector.shape_cast %270 : vector<1x1x128xf32> to vector<1x128xf32>
    %272 = arith.index_cast %c1_i32 : i32 to index
    %c0_93 = arith.constant 0 : index
    %c0_94 = arith.constant 0 : index
    %273 = vector.load %arg9[%272, %c0_93, %c0_94] : memref<2x1x128xf32, #tpu.memory_space<vmem>>, vector<1x1x128xf32>
    %274 = vector.shape_cast %273 : vector<1x1x128xf32> to vector<1x128xf32>
    %cst_95 = arith.constant dense<0.000000e+00> : vector<16xf32>
    %275 = vector.multi_reduction <add>, %268, %cst_95 [1] : vector<16x128xf32> to vector<16xf32>
    %276 = vector.shape_cast %275 : vector<16xf32> to vector<16x1xf32>
    %cst_96 = arith.constant 1.280000e+02 : f32
    %277 = vector.broadcast %cst_96 : f32 to vector<16x1xf32>
    %278 = arith.divf %276, %277 : vector<16x1xf32>
    %279 = vector.broadcast %278 : vector<16x1xf32> to vector<16x128xf32>
    %280 = arith.subf %268, %279 : vector<16x128xf32>
    %281 = arith.mulf %280, %280 : vector<16x128xf32>
    %cst_97 = arith.constant dense<0.000000e+00> : vector<16xf32>
    %282 = vector.multi_reduction <add>, %281, %cst_97 [1] : vector<16x128xf32> to vector<16xf32>
    %283 = vector.shape_cast %282 : vector<16xf32> to vector<16x1xf32>
    %cst_98 = arith.constant 1.280000e+02 : f32
    %284 = vector.broadcast %cst_98 : f32 to vector<16x1xf32>
    %285 = arith.divf %283, %284 : vector<16x1xf32>
    %286 = vector.broadcast %278 : vector<16x1xf32> to vector<16x128xf32>
    %287 = arith.subf %268, %286 : vector<16x128xf32>
    %cst_99 = arith.constant 9.99999996E-13 : f32
    %288 = vector.broadcast %cst_99 : f32 to vector<16x1xf32>
    %289 = arith.addf %285, %288 : vector<16x1xf32>
    %290 = math.rsqrt %289 : vector<16x1xf32>
    %291 = vector.broadcast %290 : vector<16x1xf32> to vector<16x128xf32>
    %292 = arith.mulf %287, %291 : vector<16x128xf32>
    %293 = vector.broadcast %271 : vector<1x128xf32> to vector<16x128xf32>
    %294 = arith.mulf %292, %293 : vector<16x128xf32>
    %295 = vector.broadcast %274 : vector<1x128xf32> to vector<16x128xf32>
    %296 = arith.addf %294, %295 : vector<16x128xf32>
    %297 = arith.truncf %296 : vector<16x128xf32> to vector<16x128xbf16>
    %298 = arith.index_cast %c1_i32 : i32 to index
    %c0_100 = arith.constant 0 : index
    %c0_101 = arith.constant 0 : index
    %299 = vector.load %arg10[%298, %c0_100, %c0_101] : memref<2x128x256xbf16, #tpu.memory_space<vmem>>, vector<1x128x256xbf16>
    %300 = vector.shape_cast %299 : vector<1x128x256xbf16> to vector<128x256xbf16>
    %cst_102 = arith.constant dense<0.000000e+00> : vector<16x256xf32>
    %301 = tpu.matmul %297, %300, %cst_102 {dimension_numbers = #tpu.dot_dimension_numbers<[1], [0], [0], [1], [0, 0, 1, 1], [], []>} : vector<16x128xbf16>, vector<128x256xbf16>, vector<16x256xf32> -> vector<16x256xf32>
    %302 = arith.index_cast %c1_i32 : i32 to index
    %c0_103 = arith.constant 0 : index
    %c0_104 = arith.constant 0 : index
    %303 = vector.load %arg11[%302, %c0_103, %c0_104] : memref<2x1x256xf32, #tpu.memory_space<vmem>>, vector<1x1x256xf32>
    %304 = vector.shape_cast %303 : vector<1x1x256xf32> to vector<1x256xf32>
    %305 = vector.broadcast %304 : vector<1x256xf32> to vector<16x256xf32>
    %306 = arith.addf %301, %305 : vector<16x256xf32>
    %cst_105 = arith.constant 5.000000e-01 : f32
    %307 = vector.broadcast %cst_105 : f32 to vector<16x256xf32>
    %308 = arith.mulf %307, %306 : vector<16x256xf32>
    %cst_106 = arith.constant 4.471500e-02 : f32
    %309 = vector.broadcast %cst_106 : f32 to vector<16x256xf32>
    %310 = arith.mulf %309, %306 : vector<16x256xf32>
    %311 = arith.mulf %310, %306 : vector<16x256xf32>
    %312 = arith.mulf %311, %306 : vector<16x256xf32>
    %313 = arith.addf %306, %312 : vector<16x256xf32>
    %cst_107 = arith.constant 0.797884583 : f32
    %314 = vector.broadcast %cst_107 : f32 to vector<16x256xf32>
    %315 = arith.mulf %314, %313 : vector<16x256xf32>
    %316 = math.tanh %315 : vector<16x256xf32>
    %cst_108 = arith.constant 1.000000e+00 : f32
    %317 = vector.broadcast %cst_108 : f32 to vector<16x256xf32>
    %318 = arith.addf %317, %316 : vector<16x256xf32>
    %319 = arith.mulf %308, %318 : vector<16x256xf32>
    %320 = arith.truncf %319 : vector<16x256xf32> to vector<16x256xbf16>
    %321 = arith.index_cast %c1_i32 : i32 to index
    %c0_109 = arith.constant 0 : index
    %c0_110 = arith.constant 0 : index
    %322 = vector.load %arg12[%321, %c0_109, %c0_110] : memref<2x256x128xbf16, #tpu.memory_space<vmem>>, vector<1x256x128xbf16>
    %323 = vector.shape_cast %322 : vector<1x256x128xbf16> to vector<256x128xbf16>
    %cst_111 = arith.constant dense<0.000000e+00> : vector<16x128xf32>
    %324 = tpu.matmul %320, %323, %cst_111 {dimension_numbers = #tpu.dot_dimension_numbers<[1], [0], [0], [1], [0, 0, 1, 1], [], []>} : vector<16x256xbf16>, vector<256x128xbf16>, vector<16x128xf32> -> vector<16x128xf32>
    %325 = arith.index_cast %c1_i32 : i32 to index
    %c0_112 = arith.constant 0 : index
    %c0_113 = arith.constant 0 : index
    %326 = vector.load %arg13[%325, %c0_112, %c0_113] : memref<2x1x128xf32, #tpu.memory_space<vmem>>, vector<1x1x128xf32>
    %327 = vector.shape_cast %326 : vector<1x1x128xf32> to vector<1x128xf32>
    %328 = vector.broadcast %327 : vector<1x128xf32> to vector<16x128xf32>
    %329 = arith.addf %324, %328 : vector<16x128xf32>
    %330 = arith.addf %296, %329 : vector<16x128xf32>
    %331 = arith.index_cast %c1_i32 : i32 to index
    %c0_114 = arith.constant 0 : index
    %c0_115 = arith.constant 0 : index
    %332 = vector.load %arg14[%331, %c0_114, %c0_115] : memref<2x1x128xf32, #tpu.memory_space<vmem>>, vector<1x1x128xf32>
    %333 = vector.shape_cast %332 : vector<1x1x128xf32> to vector<1x128xf32>
    %334 = arith.index_cast %c1_i32 : i32 to index
    %c0_116 = arith.constant 0 : index
    %c0_117 = arith.constant 0 : index
    %335 = vector.load %arg15[%334, %c0_116, %c0_117] : memref<2x1x128xf32, #tpu.memory_space<vmem>>, vector<1x1x128xf32>
    %336 = vector.shape_cast %335 : vector<1x1x128xf32> to vector<1x128xf32>
    %cst_118 = arith.constant dense<0.000000e+00> : vector<16xf32>
    %337 = vector.multi_reduction <add>, %330, %cst_118 [1] : vector<16x128xf32> to vector<16xf32>
    %338 = vector.shape_cast %337 : vector<16xf32> to vector<16x1xf32>
    %cst_119 = arith.constant 1.280000e+02 : f32
    %339 = vector.broadcast %cst_119 : f32 to vector<16x1xf32>
    %340 = arith.divf %338, %339 : vector<16x1xf32>
    %341 = vector.broadcast %340 : vector<16x1xf32> to vector<16x128xf32>
    %342 = arith.subf %330, %341 : vector<16x128xf32>
    %343 = arith.mulf %342, %342 : vector<16x128xf32>
    %cst_120 = arith.constant dense<0.000000e+00> : vector<16xf32>
    %344 = vector.multi_reduction <add>, %343, %cst_120 [1] : vector<16x128xf32> to vector<16xf32>
    %345 = vector.shape_cast %344 : vector<16xf32> to vector<16x1xf32>
    %cst_121 = arith.constant 1.280000e+02 : f32
    %346 = vector.broadcast %cst_121 : f32 to vector<16x1xf32>
    %347 = arith.divf %345, %346 : vector<16x1xf32>
    %348 = vector.broadcast %340 : vector<16x1xf32> to vector<16x128xf32>
    %349 = arith.subf %330, %348 : vector<16x128xf32>
    %cst_122 = arith.constant 9.99999996E-13 : f32
    %350 = vector.broadcast %cst_122 : f32 to vector<16x1xf32>
    %351 = arith.addf %347, %350 : vector<16x1xf32>
    %352 = math.rsqrt %351 : vector<16x1xf32>
    %353 = vector.broadcast %352 : vector<16x1xf32> to vector<16x128xf32>
    %354 = arith.mulf %349, %353 : vector<16x128xf32>
    %355 = vector.broadcast %333 : vector<1x128xf32> to vector<16x128xf32>
    %356 = arith.mulf %354, %355 : vector<16x128xf32>
    %357 = vector.broadcast %336 : vector<1x128xf32> to vector<16x128xf32>
    %358 = arith.addf %356, %357 : vector<16x128xf32>
    %c2_i32 = arith.constant 2 : i32
    %359 = vector.shape_cast %358 : vector<16x128xf32> to vector<2x8x128xf32>
    %360 = vector.extract_strided_slice %359 {offsets = [0, 0, 0], sizes = [2, 1, 128], strides = [1, 1, 1]} : vector<2x8x128xf32> to vector<2x1x128xf32>
    %361 = vector.shape_cast %360 : vector<2x1x128xf32> to vector<2x128xf32>
    %362 = arith.truncf %361 : vector<2x128xf32> to vector<2x128xbf16>
    %c0_123 = arith.constant 0 : index
    %c0_124 = arith.constant 0 : index
    %363 = vector.load %arg16[%c0_123, %c0_124] : memref<128x128xbf16, #tpu.memory_space<vmem>>, vector<128x128xbf16>
    %cst_125 = arith.constant dense<0.000000e+00> : vector<2x128xf32>
    %364 = tpu.matmul %362, %363, %cst_125 {dimension_numbers = #tpu.dot_dimension_numbers<[1], [0], [0], [1], [0, 0, 1, 1], [], []>} : vector<2x128xbf16>, vector<128x128xbf16>, vector<2x128xf32> -> vector<2x128xf32>
    %c0_126 = arith.constant 0 : index
    %c0_127 = arith.constant 0 : index
    %365 = vector.load %arg17[%c0_126, %c0_127] : memref<1x128xf32, #tpu.memory_space<vmem>>, vector<1x128xf32>
    %366 = vector.broadcast %365 : vector<1x128xf32> to vector<2x128xf32>
    %367 = arith.addf %364, %366 : vector<2x128xf32>
    %368 = math.tanh %367 : vector<2x128xf32>
    %369 = arith.mulf %368, %368 : vector<2x128xf32>
    %cst_128 = arith.constant dense<0.000000e+00> : vector<2xf32>
    %370 = vector.multi_reduction <add>, %369, %cst_128 [1] : vector<2x128xf32> to vector<2xf32>
    %371 = vector.shape_cast %370 : vector<2xf32> to vector<2x1xf32>
    %cst_129 = arith.constant 1.000000e-24 : f32
    %372 = vector.broadcast %cst_129 : f32 to vector<2x1xf32>
    %373 = arith.maximumf %371, %372 : vector<2x1xf32>
    %374 = math.rsqrt %373 : vector<2x1xf32>
    %375 = vector.broadcast %374 : vector<2x1xf32> to vector<2x128xf32>
    %376 = arith.mulf %368, %375 : vector<2x128xf32>
    %c0_130 = arith.constant 0 : index
    %c0_131 = arith.constant 0 : index
    %377 = vector.load %arg18[%c0_130, %c0_131] : memref<2x128xf32, #tpu.memory_space<vmem>>, vector<2x128xf32>
    tpu.vector_store %arg18[%c0_130, %c0_131], %376 {strides = array<i32>} : memref<2x128xf32, #tpu.memory_space<vmem>>, vector<2x128xf32>,
    return
  }
}

</mosaic_0001>

<llo_original>
// kernel: multilingual_sentence_embedding.1
$region0: #{multilingual_sentence_embedding.1}
  #allocation0 [shape = 'u32[]', space=smem, size = 0x4, offset = 0x4, fixed_abs, tag = 'smem constant byte address 0x4 - core index']
  #allocation1 [shape = 'u32[72,128]{1,0:T(1,128)}', space=vmem, size = 0x9000, scoped, tag = 'internal scratch']
  %s0 = inlined_call_operand.vmem [shape: f32[2,8,128], index: 0, kind: input, shape index: {}]
  %s1 = inlined_call_operand.vmem [shape: f32[2,1,8], index: 1, kind: input, shape index: {}]
  %s2 = inlined_call_operand.vmem [shape: f32[1,128], index: 2, kind: input, shape index: {}]
  %s3 = inlined_call_operand.vmem [shape: f32[1,128], index: 3, kind: input, shape index: {}]
  %s4 = inlined_call_operand.hbm [shape: bf16[2,128,384], index: 4, kind: input, shape index: {}]
  %s5 = inlined_call_operand.vmem [shape: f32[2,1,384], index: 5, kind: input, shape index: {}]
  %s6 = inlined_call_operand.vmem [shape: bf16[2,128,128], index: 6, kind: input, shape index: {}]
  %s7 = inlined_call_operand.vmem [shape: f32[2,1,128], index: 7, kind: input, shape index: {}]
  %s8 = inlined_call_operand.vmem [shape: f32[2,1,128], index: 8, kind: input, shape index: {}]
  %s9 = inlined_call_operand.vmem [shape: f32[2,1,128], index: 9, kind: input, shape index: {}]
  %s10 = inlined_call_operand.hbm [shape: bf16[2,128,256], index: 10, kind: input, shape index: {}]
  %s11 = inlined_call_operand.vmem [shape: f32[2,1,256], index: 11, kind: input, shape index: {}]
  %s12 = inlined_call_operand.hbm [shape: bf16[2,256,128], index: 12, kind: input, shape index: {}]
  %s13 = inlined_call_operand.vmem [shape: f32[2,1,128], index: 13, kind: input, shape index: {}]
  %s14 = inlined_call_operand.vmem [shape: f32[2,1,128], index: 14, kind: input, shape index: {}]
  %s15 = inlined_call_operand.vmem [shape: f32[2,1,128], index: 15, kind: input, shape index: {}]
  %s16 = inlined_call_operand.vmem [shape: bf16[128,128], index: 16, kind: input, shape index: {}]
  %s17 = inlined_call_operand.vmem [shape: f32[1,128], index: 17, kind: input, shape index: {}]
  %s18 = inlined_call_operand.hbm [shape: f32[2,128], index: 18, kind: output, shape index: {}]
  %s19 = sld [smem:[#allocation0]]
  $region94: #{multilingual_sentence_embedding.1} parent=0
    _
  %s21 = ssub.s32 1, %s19
  %s22 = scalar_select 0, %s21, %s19
  $region1: #{multilingual_sentence_embedding.1} parent=0
    #allocation2 [shape = 'u8[196608]{0}', space=vmem, size = 0x30000, scoped, tag = 'input window, operand 4, single buffered']
    #allocation3 [shape = 's32[1]{0}', space=sflag, size = 0x4, scoped, tag = 'scoped memory for multilingual_sentence_embedding.1']
    #allocation4 [shape = 's32[1]{0}', space=sflag, size = 0x4, scoped, tag = 'scoped memory for multilingual_sentence_embedding.1']
    #allocation5 [shape = 'u8[131072]{0}', space=vmem, size = 0x20000, scoped, tag = 'input window, operand 10, single buffered']
    #allocation6 [shape = 's32[1]{0}', space=sflag, size = 0x4, scoped, tag = 'scoped memory for multilingual_sentence_embedding.1']
    #allocation7 [shape = 'u8[131072]{0}', space=vmem, size = 0x20000, scoped, tag = 'input window, operand 12, single buffered']
    #allocation8 [shape = 'u8[1024]{0}', space=vmem, size = 0x400, scoped, tag = 'output window, operand 0, single buffered']
    %23 = vsyncpa [#allocation3], 0
    %24 = vsyncpa [#allocation6], 0
    %25 = vsyncpa [#allocation4], 0
    // Predicated region
    $region2: #{multilingual_sentence_embedding.1} parent=1 // pred_check
      _
    $region3: #{multilingual_sentence_embedding.1} parent=1 // pred_check_branch
      %27 = sbr.rel (0) target = $region5
    $region4: #{multilingual_sentence_embedding.1} parent=1 // pred_region
      _
    $region5: #{multilingual_sentence_embedding.1} parent=1 // pred_fallthru
      _
    // Predicated region
    $region6: #{multilingual_sentence_embedding.1} parent=1 // pred_check
      _
    $region7: #{multilingual_sentence_embedding.1} parent=1 // pred_check_branch
      %29 = sbr.rel (0) target = $region9
    $region8: #{multilingual_sentence_embedding.1} parent=1 // pred_region
      _
    $region9: #{multilingual_sentence_embedding.1} parent=1 // pred_fallthru
      _
    // Predicated region
    $region10: #{multilingual_sentence_embedding.1} parent=1 // pred_check
      _
    $region11: #{multilingual_sentence_embedding.1} parent=1 // pred_check_branch
      %31 = sbr.rel (0) target = $region13
    $region12: #{multilingual_sentence_embedding.1} parent=1 // pred_region
      _
    $region13: #{multilingual_sentence_embedding.1} parent=1 // pred_fallthru
      _
    // Predicated region
    $region14: #{multilingual_sentence_embedding.1} parent=1 // pred_check
      _
    $region15: #{multilingual_sentence_embedding.1} parent=1 // pred_check_branch
      %33 = sbr.rel (0) target = $region17
    $region16: #{multilingual_sentence_embedding.1} parent=1 // pred_region
      _
    $region17: #{multilingual_sentence_embedding.1} parent=1 // pred_fallthru
      _
    // Predicated region
    $region18: #{multilingual_sentence_embedding.1} parent=1 // pred_check
      _
    $region19: #{multilingual_sentence_embedding.1} parent=1 // pred_check_branch
      %35 = sbr.rel (0) target = $region21
    $region20: #{multilingual_sentence_embedding.1} parent=1 // pred_region
      %37 = vsyncadd [#allocation3], 0
      %s38 = sshll.u32 %s4, 4
      %s39 = int_to_ptr.hbm [resolvable:$true] %s38
      %s40 = sshll.u32 [#allocation2], 4
      %s41 = int_to_ptr.vmem [resolvable:$true] %s40
      %46 = dma.hbm_to_vmem [thread:$0]  %s39, 6144, %s41, [#allocation3], 192, 192, 12
    $region21: #{multilingual_sentence_embedding.1} parent=1 // pred_fallthru
      _
    // Predicated region
    $region22: #{multilingual_sentence_embedding.1} parent=1 // pred_check
      _
    $region23: #{multilingual_sentence_embedding.1} parent=1 // pred_check_branch
      %48 = sbr.rel (0) target = $region25
    $region24: #{multilingual_sentence_embedding.1} parent=1 // pred_region
      _
    $region25: #{multilingual_sentence_embedding.1} parent=1 // pred_fallthru
      _
    // Predicated region
    $region26: #{multilingual_sentence_embedding.1} parent=1 // pred_check
      _
    $region27: #{multilingual_sentence_embedding.1} parent=1 // pred_check_branch
      %50 = sbr.rel (0) target = $region29
    $region28: #{multilingual_sentence_embedding.1} parent=1 // pred_region
      _
    $region29: #{multilingual_sentence_embedding.1} parent=1 // pred_fallthru
      _
    // Predicated region
    $region30: #{multilingual_sentence_embedding.1} parent=1 // pred_check
      _
    $region31: #{multilingual_sentence_embedding.1} parent=1 // pred_check_branch
      %52 = sbr.rel (0) target = $region33
    $region32: #{multilingual_sentence_embedding.1} parent=1 // pred_region
      _
    $region33: #{multilingual_sentence_embedding.1} parent=1 // pred_fallthru
      _
    // Predicated region
    $region34: #{multilingual_sentence_embedding.1} parent=1 // pred_check
      _
    $region35: #{multilingual_sentence_embedding.1} parent=1 // pred_check_branch
      %54 = sbr.rel (0) target = $region37
    $region36: #{multilingual_sentence_embedding.1} parent=1 // pred_region
      _
    $region37: #{multilingual_sentence_embedding.1} parent=1 // pred_fallthru
      _
    // Predicated region
    $region38: #{multilingual_sentence_embedding.1} parent=1 // pred_check
      _
    $region39: #{multilingual_sentence_embedding.1} parent=1 // pred_check_branch
      %56 = sbr.rel (0) target = $region41
    $region40: #{multilingual_sentence_embedding.1} parent=1 // pred_region
      _
    $region41: #{multilingual_sentence_embedding.1} parent=1 // pred_fallthru
      _
    // Predicated region
    $region42: #{multilingual_sentence_embedding.1} parent=1 // pred_check
      _
    $region43: #{multilingual_sentence_embedding.1} parent=1 // pred_check_branch
      %58 = sbr.rel (0) target = $region45
    $region44: #{multilingual_sentence_embedding.1} parent=1 // pred_region
      %60 = vsyncadd [#allocation6], 0
      %s61 = sshll.u32 %s10, 4
      %s62 = int_to_ptr.hbm [resolvable:$true] %s61
      %s63 = sshll.u32 [#allocation5], 4
      %s64 = int_to_ptr.vmem [resolvable:$true] %s63
      %69 = dma.hbm_to_vmem [thread:$0]  %s62, 4096, %s64, [#allocation6], 128, 128, 8
    $region45: #{multilingual_sentence_embedding.1} parent=1 // pred_fallthru
      _
    // Predicated region
    $region46: #{multilingual_sentence_embedding.1} parent=1 // pred_check
      _
    $region47: #{multilingual_sentence_embedding.1} parent=1 // pred_check_branch
      %71 = sbr.rel (0) target = $region49
    $region48: #{multilingual_sentence_embedding.1} parent=1 // pred_region
      _
    $region49: #{multilingual_sentence_embedding.1} parent=1 // pred_fallthru
      _
    // Predicated region
    $region50: #{multilingual_sentence_embedding.1} parent=1 // pred_check
      _
    $region51: #{multilingual_sentence_embedding.1} parent=1 // pred_check_branch
      %73 = sbr.rel (0) target = $region53
    $region52: #{multilingual_sentence_embedding.1} parent=1 // pred_region
      %75 = vsyncadd [#allocation6], 0
      %s76 = sshll.u32 %s12, 4
      %s77 = int_to_ptr.hbm [resolvable:$true] %s76
      %s78 = sshll.u32 [#allocation7], 4
      %s79 = int_to_ptr.vmem [resolvable:$true] %s78
      %84 = dma.hbm_to_vmem [thread:$0]  %s77, 4096, %s79, [#allocation6], 64, 64, 4
    $region53: #{multilingual_sentence_embedding.1} parent=1 // pred_fallthru
      _
    // Predicated region
    $region54: #{multilingual_sentence_embedding.1} parent=1 // pred_check
      _
    $region55: #{multilingual_sentence_embedding.1} parent=1 // pred_check_branch
      %86 = sbr.rel (0) target = $region57
    $region56: #{multilingual_sentence_embedding.1} parent=1 // pred_region
      _
    $region57: #{multilingual_sentence_embedding.1} parent=1 // pred_fallthru
      _
    // Predicated region
    $region58: #{multilingual_sentence_embedding.1} parent=1 // pred_check
      _
    $region59: #{multilingual_sentence_embedding.1} parent=1 // pred_check_branch
      %88 = sbr.rel (0) target = $region61
    $region60: #{multilingual_sentence_embedding.1} parent=1 // pred_region
      _
    $region61: #{multilingual_sentence_embedding.1} parent=1 // pred_fallthru
      _
    // Predicated region
    $region62: #{multilingual_sentence_embedding.1} parent=1 // pred_check
      _
    $region63: #{multilingual_sentence_embedding.1} parent=1 // pred_check_branch
      %90 = sbr.rel (0) target = $region65
    $region64: #{multilingual_sentence_embedding.1} parent=1 // pred_region
      _
    $region65: #{multilingual_sentence_embedding.1} parent=1 // pred_fallthru
      _
    // Predicated region
    $region66: #{multilingual_sentence_embedding.1} parent=1 // pred_check
      _
    $region67: #{multilingual_sentence_embedding.1} parent=1 // pred_check_branch
      %92 = sbr.rel (0) target = $region69
    $region68: #{multilingual_sentence_embedding.1} parent=1 // pred_region
      _
    $region69: #{multilingual_sentence_embedding.1} parent=1 // pred_fallthru
      _
    // Predicated region
    $region70: #{multilingual_sentence_embedding.1} parent=1 // pred_check
      _
    $region71: #{multilingual_sentence_embedding.1} parent=1 // pred_check_branch
      %94 = sbr.rel (0) target = $region73
    $region72: #{multilingual_sentence_embedding.1} parent=1 // pred_region
      _
    $region73: #{multilingual_sentence_embedding.1} parent=1 // pred_fallthru
      _
    // Predicated region
    $region74: #{multilingual_sentence_embedding.1} parent=1 // pred_check
      _
    $region75: #{multilingual_sentence_embedding.1} parent=1 // pred_check_branch
      %96 = sbr.rel (0) target = $region77
    $region76: #{multilingual_sentence_embedding.1} parent=1 // pred_region
      %98 = dma.done [#allocation3], 6144
    $region77: #{multilingual_sentence_embedding.1} parent=1 // pred_fallthru
      _
    // Predicated region
    $region78: #{multilingual_sentence_embedding.1} parent=1 // pred_check
      _
    $region79: #{multilingual_sentence_embedding.1} parent=1 // pred_check_branch
      %100 = sbr.rel (0) target = $region81
    $region80: #{multilingual_sentence_embedding.1} parent=1 // pred_region
      %102 = dma.done [#allocation6], 4096
    $region81: #{multilingual_sentence_embedding.1} parent=1 // pred_fallthru
      _
    // Predicated region
    $region82: #{multilingual_sentence_embedding.1} parent=1 // pred_check
      _
    $region83: #{multilingual_sentence_embedding.1} parent=1 // pred_check_branch
      %104 = sbr.rel (0) target = $region85
    $region84: #{multilingual_sentence_embedding.1} parent=1 // pred_region
      %106 = dma.done [#allocation6], 4096
    $region85: #{multilingual_sentence_embedding.1} parent=1 // pred_fallthru
      _
    %v108 = vld [vmem:[%s0] sm:$0xff]
    %v109 = vld [vmem:[%s0 + $0x8] sm:$0xff]
    %v110 = vld [vmem:[%s2] sm:$0x1]
    %v111 = vld [vmem:[%s3] sm:$0x1]
    %112 = vadd.xlane.f32.xlu0 %v108
    %v113 = vpop.xlane.xlu0 %112
    %114 = vadd.xlane.f32.xlu0 %v109
    %v115 = vpop.xlane.xlu0 %114
    %v116 = vrcp.pop 128.0
    %v117 = vmul.f32 128.0, %v116
    %v118 = vsub.f32 1.0, %v117
    %v119 = vmul.f32 %v116, %v118
    %v120 = vadd.f32 %v116, %v119
    %vm121 = vweird.f32 %v116
    %v122 = vsel %vm121, %v116, %v120
    %v123 = vmul.f32 %v113, %v122
    %v124 = vmul.f32 %v115, %v122
    %v125 = vsub.f32 %v108, %v123
    %v126 = vsub.f32 %v109, %v124
    %v127 = vmul.f32 %v125, %v125
    %v128 = vmul.f32 %v126, %v126
    %129 = vadd.xlane.f32.xlu0 %v127
    %v130 = vpop.xlane.xlu0 %129
    %131 = vadd.xlane.f32.xlu0 %v128
    %v132 = vpop.xlane.xlu0 %131
    %v133 = vmul.f32 %v130, %v122
    %v134 = vmul.f32 %v132, %v122
    %v135 = vadd.f32 %v133, 1e-12
    %v136 = vadd.f32 %v134, 1e-12
    %v137 = vrsqrt.pop %v135
    %v138 = vmul.f32 %v137, %v135
    %v139 = vmul.f32 %v138, %v137
    %v140 = vmul.f32 0.5, %v139
    %v141 = vsub.f32 1.5, %v140
    %v142 = vmul.f32 %v137, %v141
    %vm143 = vweird.f32 %v135
    %vm144 = vweird.f32 %v137
    %vm145 = vmor %vm143, %vm144
    %v146 = vsel %vm145, %v137, %v142
    %v147 = vrsqrt.pop %v136
    %v148 = vmul.f32 %v147, %v136
    %v149 = vmul.f32 %v148, %v147
    %v150 = vmul.f32 0.5, %v149
    %v151 = vsub.f32 1.5, %v150
    %v152 = vmul.f32 %v147, %v151
    %vm153 = vweird.f32 %v136
    %vm154 = vweird.f32 %v147
    %vm155 = vmor %vm153, %vm154
    %v156 = vsel %vm155, %v147, %v152
    %v157 = vmul.f32 %v125, %v146
    %v158 = vmul.f32 %v126, %v156
    %v160 = vperm.slane %v110, 0
    %v162 = vmul.f32 %v157, %v160
    %v163 = vmul.f32 %v158, %v160
    %v165 = vperm.slane %v111, 0
    %v167 = vadd.f32 %v162, %v165
    %v168 = vadd.f32 %v163, %v165
    %v169 = vld [vmem:[%s1] sm:$0x1]
    %v170 = vld [vmem:[%s1 + $0x1] sm:$0x1]
    %v171 = vsub.f32 1.0, %v169
    %v172 = vsub.f32 1.0, %v170
    %v173 = vmul.f32 %v171, -1e+09
    %v174 = vmul.f32 %v172, -1e+09
    %v175 = vpack.c.bf16 %v168, %v167
    %v176 = vld [vmem:[#allocation2] sm:$0xff]
    %v177 = vld [vmem:[#allocation2 + $0x8] sm:$0xf]
    %v178 = vld [vmem:[#allocation2 + $0xc] sm:$0xff]
    %v179 = vld [vmem:[#allocation2 + $0x14] sm:$0xf]
    %v180 = vld [vmem:[#allocation2 + $0x18] sm:$0xff]
    %v181 = vld [vmem:[#allocation2 + $0x20] sm:$0xf]
    %v182 = vld [vmem:[#allocation2 + $0x24] sm:$0xff]
    %v183 = vld [vmem:[#allocation2 + $0x2c] sm:$0xf]
    %v184 = vld [vmem:[#allocation2 + $0x30] sm:$0xff]
    %v185 = vld [vmem:[#allocation2 + $0x38] sm:$0xf]
    %v186 = vld [vmem:[#allocation2 + $0x3c] sm:$0xff]
    %v187 = vld [vmem:[#allocation2 + $0x44] sm:$0xf]
    %v188 = vld [vmem:[#allocation2 + $0x48] sm:$0xff]
    %v189 = vld [vmem:[#allocation2 + $0x50] sm:$0xf]
    %v190 = vld [vmem:[#allocation2 + $0x54] sm:$0xff]
    %v191 = vld [vmem:[#allocation2 + $0x5c] sm:$0xf]
    %v192 = vld [vmem:[#allocation2 + $0x60] sm:$0xff]
    %v193 = vld [vmem:[#allocation2 + $0x68] sm:$0xf]
    %v194 = vld [vmem:[#allocation2 + $0x6c] sm:$0xff]
    %v195 = vld [vmem:[#allocation2 + $0x74] sm:$0xf]
    %v196 = vld [vmem:[#allocation2 + $0x78] sm:$0xff]
    %v197 = vld [vmem:[#allocation2 + $0x80] sm:$0xf]
    %v198 = vld [vmem:[#allocation2 + $0x84] sm:$0xff]
    %v199 = vld [vmem:[#allocation2 + $0x8c] sm:$0xf]
    %v200 = vld [vmem:[#allocation2 + $0x90] sm:$0xff]
    %v201 = vld [vmem:[#allocation2 + $0x98] sm:$0xf]
    %v202 = vld [vmem:[#allocation2 + $0x9c] sm:$0xff]
    %v203 = vld [vmem:[#allocation2 + $0xa4] sm:$0xf]
    %v204 = vld [vmem:[#allocation2 + $0xa8] sm:$0xff]
    %v205 = vld [vmem:[#allocation2 + $0xb0] sm:$0xf]
    %v206 = vld [vmem:[#allocation2 + $0xb4] sm:$0xff]
    %v207 = vld [vmem:[#allocation2 + $0xbc] sm:$0xf]
    %v208 = vld [vmem:[%s5] sm:$0x7]
    %v210 = vperm.slane %v208, 0
    %v211 = vperm.slane %v208, 1
    %v212 = vperm.slane %v208, 2
    %v248 = vunpack.c.l.b16 %v176
    %v249 = vunpack.c.h.b16 %v176
    %v250 = vunpack.c.l.b16 %v177
    %v251 = vunpack.c.l.b16 %v178
    %v252 = vunpack.c.h.b16 %v178
    %v253 = vunpack.c.l.b16 %v179
    %v254 = vunpack.c.l.b16 %v180
    %v255 = vunpack.c.h.b16 %v180
    %v256 = vunpack.c.l.b16 %v181
    %v257 = vunpack.c.l.b16 %v182
    %v258 = vunpack.c.h.b16 %v182
    %v259 = vunpack.c.l.b16 %v183
    %v260 = vunpack.c.l.b16 %v184
    %v261 = vunpack.c.h.b16 %v184
    %v262 = vunpack.c.l.b16 %v185
    %v263 = vunpack.c.l.b16 %v186
    %v264 = vunpack.c.h.b16 %v186
    %v265 = vunpack.c.l.b16 %v187
    %v266 = vunpack.c.l.b16 %v188
    %v267 = vunpack.c.h.b16 %v188
    %v268 = vunpack.c.l.b16 %v189
    %v269 = vunpack.c.l.b16 %v190
    %v270 = vunpack.c.h.b16 %v190
    %v271 = vunpack.c.l.b16 %v191
    %v272 = vunpack.c.l.b16 %v192
    %v273 = vunpack.c.h.b16 %v192
    %v274 = vunpack.c.l.b16 %v193
    %v275 = vunpack.c.l.b16 %v194
    %v276 = vunpack.c.h.b16 %v194
    %v277 = vunpack.c.l.b16 %v195
    %v278 = vunpack.c.l.b16 %v196
    %v279 = vunpack.c.h.b16 %v196
    %v280 = vunpack.c.l.b16 %v197
    %v281 = vunpack.c.l.b16 %v198
    %v282 = vunpack.c.h.b16 %v198
    %v283 = vunpack.c.l.b16 %v199
    %v284 = vunpack.c.l.b16 %v200
    %v285 = vunpack.c.h.b16 %v200
    %v286 = vunpack.c.l.b16 %v201
    %v287 = vunpack.c.l.b16 %v202
    %v288 = vunpack.c.h.b16 %v202
    %v289 = vunpack.c.l.b16 %v203
    %v290 = vunpack.c.l.b16 %v204
    %v291 = vunpack.c.h.b16 %v204
    %v292 = vunpack.c.l.b16 %v205
    %v293 = vunpack.c.l.b16 %v206
    %v294 = vunpack.c.h.b16 %v206
    %v295 = vunpack.c.l.b16 %v207
    %v296 = vpack.c.b16 %v251, %v248
    %v297 = vpack.c.b16 %v252, %v249
    %v298 = vpack.c.b16 %v253, %v250
    %v299 = vpack.c.b16 %v257, %v254
    %v300 = vpack.c.b16 %v258, %v255
    %v301 = vpack.c.b16 %v259, %v256
    %v302 = vpack.c.b16 %v263, %v260
    %v303 = vpack.c.b16 %v264, %v261
    %v304 = vpack.c.b16 %v265, %v262
    %v305 = vpack.c.b16 %v269, %v266
    %v306 = vpack.c.b16 %v270, %v267
    %v307 = vpack.c.b16 %v271, %v268
    %v308 = vpack.c.b16 %v275, %v272
    %v309 = vpack.c.b16 %v276, %v273
    %v310 = vpack.c.b16 %v277, %v274
    %v311 = vpack.c.b16 %v281, %v278
    %v312 = vpack.c.b16 %v282, %v279
    %v313 = vpack.c.b16 %v283, %v280
    %v314 = vpack.c.b16 %v287, %v284
    %v315 = vpack.c.b16 %v288, %v285
    %v316 = vpack.c.b16 %v289, %v286
    %v317 = vpack.c.b16 %v293, %v290
    %v318 = vpack.c.b16 %v294, %v291
    %v319 = vpack.c.b16 %v295, %v292
    %344 = vmatpush.bf16.msra.mxu0 %v317
    %345 = vmatpush.bf16.msra.mxu0 %v314
    %346 = vmatpush.bf16.msra.mxu0 %v311
    %347 = vmatpush.bf16.msra.mxu0 %v308
    %348 = vmatpush.bf16.msra.mxu0 %v305
    %349 = vmatpush.bf16.msra.mxu0 %v302
    %350 = vmatpush.bf16.msra.mxu0 %v299
    %351 = vmatpush.bf16.msra.mxu0 %v296
    %352 = vmatmul.bf16.gmra.mxu0 %v175
    %v353 = vpop.f32.mrf.mxu0
    %v354 = vadd.f32 %v210, %v353
    %v355 = vpop.f32.mrf.mxu0
    %v356 = vadd.f32 %v210, %v355
    %357 = vdwg.mxu0
    %358 = vmatpush.bf16.msra.mxu0 %v318
    %359 = vmatpush.bf16.msra.mxu0 %v315
    %360 = vmatpush.bf16.msra.mxu0 %v312
    %361 = vmatpush.bf16.msra.mxu0 %v309
    %362 = vmatpush.bf16.msra.mxu0 %v306
    %363 = vmatpush.bf16.msra.mxu0 %v303
    %364 = vmatpush.bf16.msra.mxu0 %v300
    %365 = vmatpush.bf16.msra.mxu0 %v297
    %366 = vmatmul.bf16.gmra.mxu0 %v175
    %v367 = vpop.f32.mrf.mxu0
    %v368 = vadd.f32 %v211, %v367
    %v369 = vpop.f32.mrf.mxu0
    %v370 = vadd.f32 %v211, %v369
    %371 = vdwg.mxu0
    %372 = vmatpush.bf16.msra.mxu0 %v319
    %373 = vmatpush.bf16.msra.mxu0 %v316
    %374 = vmatpush.bf16.msra.mxu0 %v313
    %375 = vmatpush.bf16.msra.mxu0 %v310
    %376 = vmatpush.bf16.msra.mxu0 %v307
    %377 = vmatpush.bf16.msra.mxu0 %v304
    %378 = vmatpush.bf16.msra.mxu0 %v301
    %379 = vmatpush.bf16.msra.mxu0 %v298
    %380 = vmatmul.bf16.gmra.mxu0 %v175
    %v381 = vpop.f32.mrf.mxu0
    %v382 = vadd.f32 %v212, %v381
    %v383 = vpop.f32.mrf.mxu0
    %v384 = vadd.f32 %v212, %v383
    %385 = vdwg.mxu0
    %v386 = vld [vmem:[%s6] sm:$0xf]
    %v387 = vld [vmem:[%s6 + $0x4] sm:$0xf]
    %v388 = vld [vmem:[%s6 + $0x8] sm:$0xf]
    %v389 = vld [vmem:[%s6 + $0xc] sm:$0xf]
    %v390 = vld [vmem:[%s6 + $0x10] sm:$0xf]
    %v391 = vld [vmem:[%s6 + $0x14] sm:$0xf]
    %v392 = vld [vmem:[%s6 + $0x18] sm:$0xf]
    %v393 = vld [vmem:[%s6 + $0x1c] sm:$0xf]
    %v394 = vld [vmem:[%s6 + $0x20] sm:$0xf]
    %v395 = vld [vmem:[%s6 + $0x24] sm:$0xf]
    %v396 = vld [vmem:[%s6 + $0x28] sm:$0xf]
    %v397 = vld [vmem:[%s6 + $0x2c] sm:$0xf]
    %v398 = vld [vmem:[%s6 + $0x30] sm:$0xf]
    %v399 = vld [vmem:[%s6 + $0x34] sm:$0xf]
    %v400 = vld [vmem:[%s6 + $0x38] sm:$0xf]
    %v401 = vld [vmem:[%s6 + $0x3c] sm:$0xf]
    %vm402 = vcmask 523264
    %v404 = vsel %vm402, %v354, 0
    %v407 = vsel %vm402, %v368, 0
    %409 = vmatpush.xpose.msra.mxu0 0.0
    %410 = vmatpush.xpose.msra.mxu0 0.0
    %411 = vmatpush.xpose.msra.mxu0 0.0
    %412 = vmatpush.xpose.msra.mxu0 0.0
    %413 = vmatpush.xpose.msra.mxu0 0.0
    %414 = vmatpush.xpose.msra.mxu0 0.0
    %415 = vmatpush.xpose.msra.mxu0 0.0
    %416 = vmatpush.xpose.msra.mxu0 0.0
    %417 = vmatpush.xpose.msra.mxu0 0.0
    %418 = vmatpush.xpose.msra.mxu0 0.0
    %419 = vmatpush.xpose.msra.mxu0 0.0
    %420 = vmatpush.xpose.msra.mxu0 0.0
    %421 = vmatpush.xpose.msra.mxu0 0.0
    %422 = vmatpush.xpose.msra.mxu0 0.0
    %423 = vmatpush.xpose.msra.mxu0 0.0
    %424 = vmatpush.xpose.msra.mxu0 %v407
    %425 = vmatmul.f32.gmra.mxu0 %v404
    %v426 = vpop.f32.mrf.mxu0
    %v427 = vadd.f32 0.0, %v426
    %428 = vdwg.mxu0
    %v430 = vsel %vm402, %v356, 0
    %v433 = vsel %vm402, %v370, 0
    %435 = vmatpush.xpose.msra.mxu0 0.0
    %436 = vmatpush.xpose.msra.mxu0 0.0
    %437 = vmatpush.xpose.msra.mxu0 0.0
    %438 = vmatpush.xpose.msra.mxu0 0.0
    %439 = vmatpush.xpose.msra.mxu0 0.0
    %440 = vmatpush.xpose.msra.mxu0 0.0
    %441 = vmatpush.xpose.msra.mxu0 0.0
    %442 = vmatpush.xpose.msra.mxu0 0.0
    %443 = vmatpush.xpose.msra.mxu0 0.0
    %444 = vmatpush.xpose.msra.mxu0 0.0
    %445 = vmatpush.xpose.msra.mxu0 0.0
    %446 = vmatpush.xpose.msra.mxu0 0.0
    %447 = vmatpush.xpose.msra.mxu0 0.0
    %448 = vmatpush.xpose.msra.mxu0 0.0
    %449 = vmatpush.xpose.msra.mxu0 0.0
    %450 = vmatpush.xpose.msra.mxu0 %v433
    %451 = vmatmul.f32.gmra.mxu0 %v430
    %v452 = vpop.f32.mrf.mxu0
    %v453 = vadd.f32 0.0, %v452
    %454 = vdwg.mxu0
    %v455 = vmul.f32 %v427, 0.125
    %v456 = vmul.f32 %v453, 0.125
    %v459 = vperm.slane %v173, 0
    %v460 = vperm.slane %v174, 0
    %v463 = vadd.f32 %v455, %v459
    %v464 = vadd.f32 %v456, %v460
    %vm465 = vcmask 64512
    %v466 = vsel %vm465, %v463, -inf
    %467 = vmax.xlane.f32.xlu0 %v466
    %v468 = vpop.xlane.xlu0 %467
    %v469 = vsel %vm465, %v464, -inf
    %470 = vmax.xlane.f32.xlu0 %v469
    %v471 = vpop.xlane.xlu0 %470
    %v472 = vsub.f32 %v463, %v468
    %v473 = vsub.f32 %v464, %v471
    %v474 = vmul.f32 %v472, 1.442695
    %v475 = vpow.pop %v474
    %v476 = vmul.f32 %v473, 1.442695
    %v477 = vpow.pop %v476
    %v478 = vsel %vm465, %v475, 0.0
    %479 = vadd.xlane.f32.xlu0 %v478
    %v480 = vpop.xlane.xlu0 %479
    %v481 = vsel %vm465, %v477, 0.0
    %482 = vadd.xlane.f32.xlu0 %v481
    %v483 = vpop.xlane.xlu0 %482
    %v484 = vrcp.pop %v480
    %v485 = vrcp.pop %v483
    %v486 = vmul.f32 %v475, %v484
    %v487 = vmul.f32 %v477, %v485
    %v489 = vsel %vm465, %v486, 0
    %491 = vmatpush.msra.mxu0 0.0
    %492 = vmatpush.msra.mxu0 0.0
    %493 = vmatpush.msra.mxu0 0.0
    %494 = vmatpush.msra.mxu0 0.0
    %495 = vmatpush.msra.mxu0 0.0
    %496 = vmatpush.msra.mxu0 0.0
    %497 = vmatpush.msra.mxu0 0.0
    %498 = vmatpush.msra.mxu0 0.0
    %499 = vmatpush.msra.mxu0 0.0
    %500 = vmatpush.msra.mxu0 0.0
    %501 = vmatpush.msra.mxu0 0.0
    %502 = vmatpush.msra.mxu0 0.0
    %503 = vmatpush.msra.mxu0 0.0
    %504 = vmatpush.msra.mxu0 0.0
    %505 = vmatpush.msra.mxu0 0.0
    %506 = vmatpush.msra.mxu0 %v382
    %507 = vmatmul.f32.gmra.mxu0 %v489
    %v508 = vpop.f32.mrf.mxu0
    %v509 = vadd.f32 0.0, %v508
    %510 = vdwg.mxu0
    %v512 = vsel %vm465, %v487, 0
    %514 = vmatpush.msra.mxu0 0.0
    %515 = vmatpush.msra.mxu0 0.0
    %516 = vmatpush.msra.mxu0 0.0
    %517 = vmatpush.msra.mxu0 0.0
    %518 = vmatpush.msra.mxu0 0.0
    %519 = vmatpush.msra.mxu0 0.0
    %520 = vmatpush.msra.mxu0 0.0
    %521 = vmatpush.msra.mxu0 0.0
    %522 = vmatpush.msra.mxu0 0.0
    %523 = vmatpush.msra.mxu0 0.0
    %524 = vmatpush.msra.mxu0 0.0
    %525 = vmatpush.msra.mxu0 0.0
    %526 = vmatpush.msra.mxu0 0.0
    %527 = vmatpush.msra.mxu0 0.0
    %528 = vmatpush.msra.mxu0 0.0
    %529 = vmatpush.msra.mxu0 %v384
    %530 = vmatmul.f32.gmra.mxu0 %v512
    %v531 = vpop.f32.mrf.mxu0
    %v532 = vadd.f32 0.0, %v531
    %533 = vdwg.mxu0
    %v534 = vpack.c.bf16 %v532, %v509
    %535 = vrot.lane.b32.xlu0 %v354, 64
    %v536 = vpop.permute.xlu0 %535
    %537 = vrot.lane.b32.xlu0 %v368, 64
    %v538 = vpop.permute.xlu0 %537
    %v539 = vsel %vm402, %v536, 0
    %v541 = vsel %vm402, %v538, 0
    %543 = vmatpush.xpose.msra.mxu0 0.0
    %544 = vmatpush.xpose.msra.mxu0 0.0
    %545 = vmatpush.xpose.msra.mxu0 0.0
    %546 = vmatpush.xpose.msra.mxu0 0.0
    %547 = vmatpush.xpose.msra.mxu0 0.0
    %548 = vmatpush.xpose.msra.mxu0 0.0
    %549 = vmatpush.xpose.msra.mxu0 0.0
    %550 = vmatpush.xpose.msra.mxu0 0.0
    %551 = vmatpush.xpose.msra.mxu0 0.0
    %552 = vmatpush.xpose.msra.mxu0 0.0
    %553 = vmatpush.xpose.msra.mxu0 0.0
    %554 = vmatpush.xpose.msra.mxu0 0.0
    %555 = vmatpush.xpose.msra.mxu0 0.0
    %556 = vmatpush.xpose.msra.mxu0 0.0
    %557 = vmatpush.xpose.msra.mxu0 0.0
    %558 = vmatpush.xpose.msra.mxu0 %v541
    %559 = vmatmul.f32.gmra.mxu0 %v539
    %v560 = vpop.f32.mrf.mxu0
    %v561 = vadd.f32 0.0, %v560
    %562 = vdwg.mxu0
    %563 = vrot.lane.b32.xlu0 %v356, 64
    %v564 = vpop.permute.xlu0 %563
    %565 = vrot.lane.b32.xlu0 %v370, 64
    %v566 = vpop.permute.xlu0 %565
    %v567 = vsel %vm402, %v564, 0
    %v569 = vsel %vm402, %v566, 0
    %571 = vmatpush.xpose.msra.mxu0 0.0
    %572 = vmatpush.xpose.msra.mxu0 0.0
    %573 = vmatpush.xpose.msra.mxu0 0.0
    %574 = vmatpush.xpose.msra.mxu0 0.0
    %575 = vmatpush.xpose.msra.mxu0 0.0
    %576 = vmatpush.xpose.msra.mxu0 0.0
    %577 = vmatpush.xpose.msra.mxu0 0.0
    %578 = vmatpush.xpose.msra.mxu0 0.0
    %579 = vmatpush.xpose.msra.mxu0 0.0
    %580 = vmatpush.xpose.msra.mxu0 0.0
    %581 = vmatpush.xpose.msra.mxu0 0.0
    %582 = vmatpush.xpose.msra.mxu0 0.0
    %583 = vmatpush.xpose.msra.mxu0 0.0
    %584 = vmatpush.xpose.msra.mxu0 0.0
    %585 = vmatpush.xpose.msra.mxu0 0.0
    %586 = vmatpush.xpose.msra.mxu0 %v569
    %587 = vmatmul.f32.gmra.mxu0 %v567
    %v588 = vpop.f32.mrf.mxu0
    %v589 = vadd.f32 0.0, %v588
    %590 = vdwg.mxu0
    %v591 = vmul.f32 %v561, 0.125
    %v592 = vmul.f32 %v589, 0.125
    %v593 = vadd.f32 %v591, %v459
    %v594 = vadd.f32 %v592, %v460
    %v595 = vsel %vm465, %v593, -inf
    %596 = vmax.xlane.f32.xlu0 %v595
    %v597 = vpop.xlane.xlu0 %596
    %v598 = vsel %vm465, %v594, -inf
    %599 = vmax.xlane.f32.xlu0 %v598
    %v600 = vpop.xlane.xlu0 %599
    %v601 = vsub.f32 %v593, %v597
    %v602 = vsub.f32 %v594, %v600
    %v603 = vmul.f32 %v601, 1.442695
    %v604 = vpow.pop %v603
    %v605 = vmul.f32 %v602, 1.442695
    %v606 = vpow.pop %v605
    %v607 = vsel %vm465, %v604, 0.0
    %608 = vadd.xlane.f32.xlu0 %v607
    %v609 = vpop.xlane.xlu0 %608
    %v610 = vsel %vm465, %v606, 0.0
    %611 = vadd.xlane.f32.xlu0 %v610
    %v612 = vpop.xlane.xlu0 %611
    %v613 = vrcp.pop %v609
    %v614 = vrcp.pop %v612
    %v615 = vmul.f32 %v604, %v613
    %v616 = vmul.f32 %v606, %v614
    %618 = vrot.lane.b32.xlu0 %v382, 64
    %v619 = vpop.permute.xlu0 %618
    %v622 = vsel %vm465, %v615, 0
    %624 = vmatpush.msra.mxu0 0.0
    %625 = vmatpush.msra.mxu0 0.0
    %626 = vmatpush.msra.mxu0 0.0
    %627 = vmatpush.msra.mxu0 0.0
    %628 = vmatpush.msra.mxu0 0.0
    %629 = vmatpush.msra.mxu0 0.0
    %630 = vmatpush.msra.mxu0 0.0
    %631 = vmatpush.msra.mxu0 0.0
    %632 = vmatpush.msra.mxu0 0.0
    %633 = vmatpush.msra.mxu0 0.0
    %634 = vmatpush.msra.mxu0 0.0
    %635 = vmatpush.msra.mxu0 0.0
    %636 = vmatpush.msra.mxu0 0.0
    %637 = vmatpush.msra.mxu0 0.0
    %638 = vmatpush.msra.mxu0 0.0
    %639 = vmatpush.msra.mxu0 %v619
    %640 = vmatmul.f32.gmra.mxu0 %v622
    %v641 = vpop.f32.mrf.mxu0
    %v642 = vadd.f32 0.0, %v641
    %643 = vdwg.mxu0
    %645 = vrot.lane.b32.xlu0 %v384, 64
    %v646 = vpop.permute.xlu0 %645
    %v649 = vsel %vm465, %v616, 0
    %651 = vmatpush.msra.mxu0 0.0
    %652 = vmatpush.msra.mxu0 0.0
    %653 = vmatpush.msra.mxu0 0.0
    %654 = vmatpush.msra.mxu0 0.0
    %655 = vmatpush.msra.mxu0 0.0
    %656 = vmatpush.msra.mxu0 0.0
    %657 = vmatpush.msra.mxu0 0.0
    %658 = vmatpush.msra.mxu0 0.0
    %659 = vmatpush.msra.mxu0 0.0
    %660 = vmatpush.msra.mxu0 0.0
    %661 = vmatpush.msra.mxu0 0.0
    %662 = vmatpush.msra.mxu0 0.0
    %663 = vmatpush.msra.mxu0 0.0
    %664 = vmatpush.msra.mxu0 0.0
    %665 = vmatpush.msra.mxu0 0.0
    %666 = vmatpush.msra.mxu0 %v646
    %667 = vmatmul.f32.gmra.mxu0 %v649
    %v668 = vpop.f32.mrf.mxu0
    %v669 = vadd.f32 0.0, %v668
    %670 = vdwg.mxu0
    %v671 = vpack.c.bf16 %v669, %v642
    %v680 = vunpack.c.l.b16 %v394
    %v681 = vunpack.c.l.b16 %v395
    %v682 = vunpack.c.l.b16 %v396
    %v683 = vunpack.c.l.b16 %v397
    %v684 = vunpack.c.l.b16 %v398
    %v685 = vunpack.c.l.b16 %v399
    %v686 = vunpack.c.l.b16 %v400
    %v687 = vunpack.c.l.b16 %v401
    %v688 = vpack.c.b16 %v681, %v680
    %v689 = vpack.c.b16 %v683, %v682
    %v690 = vpack.c.b16 %v685, %v684
    %v691 = vpack.c.b16 %v687, %v686
    %v697 = vsel %vm402, %v671, 0
    %699 = vmatpush.bf16.msra.mxu0 0
    %700 = vmatpush.bf16.msra.mxu0 0
    %701 = vmatpush.bf16.msra.mxu0 0
    %702 = vmatpush.bf16.msra.mxu0 0
    %703 = vmatpush.bf16.msra.mxu0 %v691
    %704 = vmatpush.bf16.msra.mxu0 %v690
    %705 = vmatpush.bf16.msra.mxu0 %v689
    %706 = vmatpush.bf16.msra.mxu0 %v688
    %707 = vmatmul.bf16.gmra.mxu0 %v697
    %v708 = vpop.f32.mrf.mxu0
    %v709 = vadd.f32 0.0, %v708
    %v710 = vpop.f32.mrf.mxu0
    %v711 = vadd.f32 0.0, %v710
    %712 = vdwg.mxu0
    %v721 = vunpack.c.l.b16 %v386
    %v722 = vunpack.c.l.b16 %v387
    %v723 = vunpack.c.l.b16 %v388
    %v724 = vunpack.c.l.b16 %v389
    %v725 = vunpack.c.l.b16 %v390
    %v726 = vunpack.c.l.b16 %v391
    %v727 = vunpack.c.l.b16 %v392
    %v728 = vunpack.c.l.b16 %v393
    %v729 = vpack.c.b16 %v722, %v721
    %v730 = vpack.c.b16 %v724, %v723
    %v731 = vpack.c.b16 %v726, %v725
    %v732 = vpack.c.b16 %v728, %v727
    %v738 = vsel %vm402, %v534, 0
    %740 = vmatpush.bf16.msra.mxu0 0
    %741 = vmatpush.bf16.msra.mxu0 0
    %742 = vmatpush.bf16.msra.mxu0 0
    %743 = vmatpush.bf16.msra.mxu0 0
    %744 = vmatpush.bf16.msra.mxu0 %v732
    %745 = vmatpush.bf16.msra.mxu0 %v731
    %746 = vmatpush.bf16.msra.mxu0 %v730
    %747 = vmatpush.bf16.msra.mxu0 %v729
    %748 = vmatmul.bf16.gmra.mxu0 %v738
    %v749 = vpop.f32.mrf.mxu0
    %v750 = vadd.f32 %v709, %v749
    %v751 = vpop.f32.mrf.mxu0
    %v752 = vadd.f32 %v711, %v751
    %753 = vdwg.mxu0
    %v754 = vld [vmem:[%s7] sm:$0x1]
    %v756 = vperm.slane %v754, 0
    %v758 = vadd.f32 %v750, %v756
    %v759 = vadd.f32 %v752, %v756
    %v760 = vadd.f32 %v167, %v758
    %v761 = vadd.f32 %v168, %v759
    %v762 = vld [vmem:[%s8] sm:$0x1]
    %v763 = vld [vmem:[%s9] sm:$0x1]
    %764 = vadd.xlane.f32.xlu0 %v760
    %v765 = vpop.xlane.xlu0 %764
    %766 = vadd.xlane.f32.xlu0 %v761
    %v767 = vpop.xlane.xlu0 %766
    %v768 = vmul.f32 %v765, %v122
    %v769 = vmul.f32 %v767, %v122
    %v770 = vsub.f32 %v760, %v768
    %v771 = vsub.f32 %v761, %v769
    %v772 = vmul.f32 %v770, %v770
    %v773 = vmul.f32 %v771, %v771
    %774 = vadd.xlane.f32.xlu0 %v772
    %v775 = vpop.xlane.xlu0 %774
    %776 = vadd.xlane.f32.xlu0 %v773
    %v777 = vpop.xlane.xlu0 %776
    %v778 = vmul.f32 %v775, %v122
    %v779 = vmul.f32 %v777, %v122
    %v780 = vadd.f32 %v778, 1e-12
    %v781 = vadd.f32 %v779, 1e-12
    %v782 = vrsqrt.pop %v780
    %v783 = vmul.f32 %v782, %v780
    %v784 = vmul.f32 %v783, %v782
    %v785 = vmul.f32 0.5, %v784
    %v786 = vsub.f32 1.5, %v785
    %v787 = vmul.f32 %v782, %v786
    %vm788 = vweird.f32 %v780
    %vm789 = vweird.f32 %v782
    %vm790 = vmor %vm788, %vm789
    %v791 = vsel %vm790, %v782, %v787
    %v792 = vrsqrt.pop %v781
    %v793 = vmul.f32 %v792, %v781
    %v794 = vmul.f32 %v793, %v792
    %v795 = vmul.f32 0.5, %v794
    %v796 = vsub.f32 1.5, %v795
    %v797 = vmul.f32 %v792, %v796
    %vm798 = vweird.f32 %v781
    %vm799 = vweird.f32 %v792
    %vm800 = vmor %vm798, %vm799
    %v801 = vsel %vm800, %v792, %v797
    %v802 = vmul.f32 %v770, %v791
    %v803 = vmul.f32 %v771, %v801
    %v805 = vperm.slane %v762, 0
    %v807 = vmul.f32 %v802, %v805
    %v808 = vmul.f32 %v803, %v805
    %v810 = vperm.slane %v763, 0
    %v812 = vadd.f32 %v807, %v810
    %v813 = vadd.f32 %v808, %v810
    %v814 = vpack.c.bf16 %v813, %v812
    %v815 = vld [vmem:[#allocation5] sm:$0xff]
    %v816 = vld [vmem:[#allocation5 + $0x8] sm:$0xff]
    %v817 = vld [vmem:[#allocation5 + $0x10] sm:$0xff]
    %v818 = vld [vmem:[#allocation5 + $0x18] sm:$0xff]
    %v819 = vld [vmem:[#allocation5 + $0x20] sm:$0xff]
    %v820 = vld [vmem:[#allocation5 + $0x28] sm:$0xff]
    %v821 = vld [vmem:[#allocation5 + $0x30] sm:$0xff]
    %v822 = vld [vmem:[#allocation5 + $0x38] sm:$0xff]
    %v823 = vld [vmem:[#allocation5 + $0x40] sm:$0xff]
    %v824 = vld [vmem:[#allocation5 + $0x48] sm:$0xff]
    %v825 = vld [vmem:[#allocation5 + $0x50] sm:$0xff]
    %v826 = vld [vmem:[#allocation5 + $0x58] sm:$0xff]
    %v827 = vld [vmem:[#allocation5 + $0x60] sm:$0xff]
    %v828 = vld [vmem:[#allocation5 + $0x68] sm:$0xff]
    %v829 = vld [vmem:[#allocation5 + $0x70] sm:$0xff]
    %v830 = vld [vmem:[#allocation5 + $0x78] sm:$0xff]
    %v831 = vld [vmem:[%s11] sm:$0x3]
    %v833 = vperm.slane %v831, 0
    %v834 = vperm.slane %v831, 1
    %v853 = vunpack.c.l.b16 %v815
    %v854 = vunpack.c.h.b16 %v815
    %v855 = vunpack.c.l.b16 %v816
    %v856 = vunpack.c.h.b16 %v816
    %v857 = vunpack.c.l.b16 %v817
    %v858 = vunpack.c.h.b16 %v817
    %v859 = vunpack.c.l.b16 %v818
    %v860 = vunpack.c.h.b16 %v818
    %v861 = vunpack.c.l.b16 %v819
    %v862 = vunpack.c.h.b16 %v819
    %v863 = vunpack.c.l.b16 %v820
    %v864 = vunpack.c.h.b16 %v820
    %v865 = vunpack.c.l.b16 %v821
    %v866 = vunpack.c.h.b16 %v821
    %v867 = vunpack.c.l.b16 %v822
    %v868 = vunpack.c.h.b16 %v822
    %v869 = vunpack.c.l.b16 %v823
    %v870 = vunpack.c.h.b16 %v823
    %v871 = vunpack.c.l.b16 %v824
    %v872 = vunpack.c.h.b16 %v824
    %v873 = vunpack.c.l.b16 %v825
    %v874 = vunpack.c.h.b16 %v825
    %v875 = vunpack.c.l.b16 %v826
    %v876 = vunpack.c.h.b16 %v826
    %v877 = vunpack.c.l.b16 %v827
    %v878 = vunpack.c.h.b16 %v827
    %v879 = vunpack.c.l.b16 %v828
    %v880 = vunpack.c.h.b16 %v828
    %v881 = vunpack.c.l.b16 %v829
    %v882 = vunpack.c.h.b16 %v829
    %v883 = vunpack.c.l.b16 %v830
    %v884 = vunpack.c.h.b16 %v830
    %v885 = vpack.c.b16 %v855, %v853
    %v886 = vpack.c.b16 %v856, %v854
    %v887 = vpack.c.b16 %v859, %v857
    %v888 = vpack.c.b16 %v860, %v858
    %v889 = vpack.c.b16 %v863, %v861
    %v890 = vpack.c.b16 %v864, %v862
    %v891 = vpack.c.b16 %v867, %v865
    %v892 = vpack.c.b16 %v868, %v866
    %v893 = vpack.c.b16 %v871, %v869
    %v894 = vpack.c.b16 %v872, %v870
    %v895 = vpack.c.b16 %v875, %v873
    %v896 = vpack.c.b16 %v876, %v874
    %v897 = vpack.c.b16 %v879, %v877
    %v898 = vpack.c.b16 %v880, %v878
    %v899 = vpack.c.b16 %v883, %v881
    %v900 = vpack.c.b16 %v884, %v882
    %917 = vmatpush.bf16.msra.mxu0 %v899
    %918 = vmatpush.bf16.msra.mxu0 %v897
    %919 = vmatpush.bf16.msra.mxu0 %v895
    %920 = vmatpush.bf16.msra.mxu0 %v893
    %921 = vmatpush.bf16.msra.mxu0 %v891
    %922 = vmatpush.bf16.msra.mxu0 %v889
    %923 = vmatpush.bf16.msra.mxu0 %v887
    %924 = vmatpush.bf16.msra.mxu0 %v885
    %925 = vmatmul.bf16.gmra.mxu0 %v814
    %v926 = vpop.f32.mrf.mxu0
    %v927 = vadd.f32 %v833, %v926
    %v928 = vpop.f32.mrf.mxu0
    %v929 = vadd.f32 %v833, %v928
    %930 = vdwg.mxu0
    %931 = vmatpush.bf16.msra.mxu0 %v900
    %932 = vmatpush.bf16.msra.mxu0 %v898
    %933 = vmatpush.bf16.msra.mxu0 %v896
    %934 = vmatpush.bf16.msra.mxu0 %v894
    %935 = vmatpush.bf16.msra.mxu0 %v892
    %936 = vmatpush.bf16.msra.mxu0 %v890
    %937 = vmatpush.bf16.msra.mxu0 %v888
    %938 = vmatpush.bf16.msra.mxu0 %v886
    %939 = vmatmul.bf16.gmra.mxu0 %v814
    %v940 = vpop.f32.mrf.mxu0
    %v941 = vadd.f32 %v834, %v940
    %v942 = vpop.f32.mrf.mxu0
    %v943 = vadd.f32 %v834, %v942
    %944 = vdwg.mxu0
    %v945 = vmul.f32 %v927, 0.5
    %v946 = vmul.f32 %v941, 0.5
    %v947 = vmul.f32 %v929, 0.5
    %v948 = vmul.f32 %v943, 0.5
    %v949 = vmul.f32 %v927, 0.044715
    %v950 = vmul.f32 %v941, 0.044715
    %v951 = vmul.f32 %v929, 0.044715
    %v952 = vmul.f32 %v943, 0.044715
    %v953 = vmul.f32 %v949, %v927
    %v954 = vmul.f32 %v950, %v941
    %v955 = vmul.f32 %v951, %v929
    %v956 = vmul.f32 %v952, %v943
    %v957 = vmul.f32 %v953, %v927
    %v958 = vmul.f32 %v954, %v941
    %v959 = vmul.f32 %v955, %v929
    %v960 = vmul.f32 %v956, %v943
    %v961 = vadd.f32 %v927, %v957
    %v962 = vadd.f32 %v941, %v958
    %v963 = vadd.f32 %v929, %v959
    %v964 = vadd.f32 %v943, %v960
    %v965 = vmul.f32 %v961, 0.7978846
    %v966 = vmul.f32 %v962, 0.7978846
    %v967 = vmul.f32 %v963, 0.7978846
    %v968 = vmul.f32 %v964, 0.7978846
    %v969 = vtanh.pop %v965
    %v970 = vtanh.pop %v966
    %v971 = vtanh.pop %v967
    %v972 = vtanh.pop %v968
    %v973 = vadd.f32 %v969, 1.0
    %v974 = vadd.f32 %v970, 1.0
    %v975 = vadd.f32 %v971, 1.0
    %v976 = vadd.f32 %v972, 1.0
    %v977 = vmul.f32 %v945, %v973
    %v978 = vmul.f32 %v946, %v974
    %v979 = vmul.f32 %v947, %v975
    %v980 = vmul.f32 %v948, %v976
    %v981 = vpack.c.bf16 %v979, %v977
    %v982 = vpack.c.bf16 %v980, %v978
    %v983 = vld [vmem:[#allocation7] sm:$0xf]
    %v984 = vld [vmem:[#allocation7 + $0x4] sm:$0xf]
    %v985 = vld [vmem:[#allocation7 + $0x8] sm:$0xf]
    %v986 = vld [vmem:[#allocation7 + $0xc] sm:$0xf]
    %v987 = vld [vmem:[#allocation7 + $0x10] sm:$0xf]
    %v988 = vld [vmem:[#allocation7 + $0x14] sm:$0xf]
    %v989 = vld [vmem:[#allocation7 + $0x18] sm:$0xf]
    %v990 = vld [vmem:[#allocation7 + $0x1c] sm:$0xf]
    %v991 = vld [vmem:[#allocation7 + $0x20] sm:$0xf]
    %v992 = vld [vmem:[#allocation7 + $0x24] sm:$0xf]
    %v993 = vld [vmem:[#allocation7 + $0x28] sm:$0xf]
    %v994 = vld [vmem:[#allocation7 + $0x2c] sm:$0xf]
    %v995 = vld [vmem:[#allocation7 + $0x30] sm:$0xf]
    %v996 = vld [vmem:[#allocation7 + $0x34] sm:$0xf]
    %v997 = vld [vmem:[#allocation7 + $0x38] sm:$0xf]
    %v998 = vld [vmem:[#allocation7 + $0x3c] sm:$0xf]
    %v999 = vld [vmem:[#allocation7 + $0x40] sm:$0xf]
    %v1000 = vld [vmem:[#allocation7 + $0x44] sm:$0xf]
    %v1001 = vld [vmem:[#allocation7 + $0x48] sm:$0xf]
    %v1002 = vld [vmem:[#allocation7 + $0x4c] sm:$0xf]
    %v1003 = vld [vmem:[#allocation7 + $0x50] sm:$0xf]
    %v1004 = vld [vmem:[#allocation7 + $0x54] sm:$0xf]
    %v1005 = vld [vmem:[#allocation7 + $0x58] sm:$0xf]
    %v1006 = vld [vmem:[#allocation7 + $0x5c] sm:$0xf]
    %v1007 = vld [vmem:[#allocation7 + $0x60] sm:$0xf]
    %v1008 = vld [vmem:[#allocation7 + $0x64] sm:$0xf]
    %v1009 = vld [vmem:[#allocation7 + $0x68] sm:$0xf]
    %v1010 = vld [vmem:[#allocation7 + $0x6c] sm:$0xf]
    %v1011 = vld [vmem:[#allocation7 + $0x70] sm:$0xf]
    %v1012 = vld [vmem:[#allocation7 + $0x74] sm:$0xf]
    %v1013 = vld [vmem:[#allocation7 + $0x78] sm:$0xf]
    %v1014 = vld [vmem:[#allocation7 + $0x7c] sm:$0xf]
    %v1015 = vld [vmem:[%s13] sm:$0x1]
    %v1017 = vperm.slane %v1015, 0
    %v1051 = vunpack.c.l.b16 %v983
    %v1052 = vunpack.c.l.b16 %v984
    %v1053 = vunpack.c.l.b16 %v985
    %v1054 = vunpack.c.l.b16 %v986
    %v1055 = vunpack.c.l.b16 %v987
    %v1056 = vunpack.c.l.b16 %v988
    %v1057 = vunpack.c.l.b16 %v989
    %v1058 = vunpack.c.l.b16 %v990
    %v1059 = vunpack.c.l.b16 %v991
    %v1060 = vunpack.c.l.b16 %v992
    %v1061 = vunpack.c.l.b16 %v993
    %v1062 = vunpack.c.l.b16 %v994
    %v1063 = vunpack.c.l.b16 %v995
    %v1064 = vunpack.c.l.b16 %v996
    %v1065 = vunpack.c.l.b16 %v997
    %v1066 = vunpack.c.l.b16 %v998
    %v1067 = vunpack.c.l.b16 %v999
    %v1068 = vunpack.c.l.b16 %v1000
    %v1069 = vunpack.c.l.b16 %v1001
    %v1070 = vunpack.c.l.b16 %v1002
    %v1071 = vunpack.c.l.b16 %v1003
    %v1072 = vunpack.c.l.b16 %v1004
    %v1073 = vunpack.c.l.b16 %v1005
    %v1074 = vunpack.c.l.b16 %v1006
    %v1075 = vunpack.c.l.b16 %v1007
    %v1076 = vunpack.c.l.b16 %v1008
    %v1077 = vunpack.c.l.b16 %v1009
    %v1078 = vunpack.c.l.b16 %v1010
    %v1079 = vunpack.c.l.b16 %v1011
    %v1080 = vunpack.c.l.b16 %v1012
    %v1081 = vunpack.c.l.b16 %v1013
    %v1082 = vunpack.c.l.b16 %v1014
    %v1083 = vpack.c.b16 %v1052, %v1051
    %v1084 = vpack.c.b16 %v1054, %v1053
    %v1085 = vpack.c.b16 %v1056, %v1055
    %v1086 = vpack.c.b16 %v1058, %v1057
    %v1087 = vpack.c.b16 %v1060, %v1059
    %v1088 = vpack.c.b16 %v1062, %v1061
    %v1089 = vpack.c.b16 %v1064, %v1063
    %v1090 = vpack.c.b16 %v1066, %v1065
    %v1091 = vpack.c.b16 %v1068, %v1067
    %v1092 = vpack.c.b16 %v1070, %v1069
    %v1093 = vpack.c.b16 %v1072, %v1071
    %v1094 = vpack.c.b16 %v1074, %v1073
    %v1095 = vpack.c.b16 %v1076, %v1075
    %v1096 = vpack.c.b16 %v1078, %v1077
    %v1097 = vpack.c.b16 %v1080, %v1079
    %v1098 = vpack.c.b16 %v1082, %v1081
    %1115 = vmatpush.bf16.msra.mxu0 %v1090
    %1116 = vmatpush.bf16.msra.mxu0 %v1089
    %1117 = vmatpush.bf16.msra.mxu0 %v1088
    %1118 = vmatpush.bf16.msra.mxu0 %v1087
    %1119 = vmatpush.bf16.msra.mxu0 %v1086
    %1120 = vmatpush.bf16.msra.mxu0 %v1085
    %1121 = vmatpush.bf16.msra.mxu0 %v1084
    %1122 = vmatpush.bf16.msra.mxu0 %v1083
    %1123 = vmatmul.bf16.gmra.mxu0 %v981
    %v1124 = vpop.f32.mrf.mxu0
    %v1125 = vadd.f32 %v1017, %v1124
    %v1126 = vpop.f32.mrf.mxu0
    %v1127 = vadd.f32 %v1017, %v1126
    %1128 = vdwg.mxu0
    %1129 = vmatpush.bf16.msra.mxu0 %v1098
    %1130 = vmatpush.bf16.msra.mxu0 %v1097
    %1131 = vmatpush.bf16.msra.mxu0 %v1096
    %1132 = vmatpush.bf16.msra.mxu0 %v1095
    %1133 = vmatpush.bf16.msra.mxu0 %v1094
    %1134 = vmatpush.bf16.msra.mxu0 %v1093
    %1135 = vmatpush.bf16.msra.mxu0 %v1092
    %1136 = vmatpush.bf16.msra.mxu0 %v1091
    %1137 = vmatmul.bf16.gmra.mxu0 %v982
    %v1138 = vpop.f32.mrf.mxu0
    %v1139 = vadd.f32 %v1125, %v1138
    %v1140 = vpop.f32.mrf.mxu0
    %v1141 = vadd.f32 %v1127, %v1140
    %1142 = vdwg.mxu0
    %v1143 = vadd.f32 %v812, %v1139
    %v1144 = vadd.f32 %v813, %v1141
    %v1145 = vld [vmem:[%s14] sm:$0x1]
    %v1146 = vld [vmem:[%s15] sm:$0x1]
    %1147 = vadd.xlane.f32.xlu0 %v1143
    %v1148 = vpop.xlane.xlu0 %1147
    %1149 = vadd.xlane.f32.xlu0 %v1144
    %v1150 = vpop.xlane.xlu0 %1149
    %v1151 = vmul.f32 %v1148, %v122
    %v1152 = vmul.f32 %v1150, %v122
    %v1153 = vsub.f32 %v1143, %v1151
    %v1154 = vsub.f32 %v1144, %v1152
    %v1155 = vmul.f32 %v1153, %v1153
    %v1156 = vmul.f32 %v1154, %v1154
    %1157 = vadd.xlane.f32.xlu0 %v1155
    %v1158 = vpop.xlane.xlu0 %1157
    %1159 = vadd.xlane.f32.xlu0 %v1156
    %v1160 = vpop.xlane.xlu0 %1159
    %v1161 = vmul.f32 %v1158, %v122
    %v1162 = vmul.f32 %v1160, %v122
    %v1163 = vadd.f32 %v1161, 1e-12
    %v1164 = vadd.f32 %v1162, 1e-12
    %v1165 = vrsqrt.pop %v1163
    %v1166 = vmul.f32 %v1165, %v1163
    %v1167 = vmul.f32 %v1166, %v1165
    %v1168 = vmul.f32 0.5, %v1167
    %v1169 = vsub.f32 1.5, %v1168
    %v1170 = vmul.f32 %v1165, %v1169
    %vm1171 = vweird.f32 %v1163
    %vm1172 = vweird.f32 %v1165
    %vm1173 = vmor %vm1171, %vm1172
    %v1174 = vsel %vm1173, %v1165, %v1170
    %v1175 = vrsqrt.pop %v1164
    %v1176 = vmul.f32 %v1175, %v1164
    %v1177 = vmul.f32 %v1176, %v1175
    %v1178 = vmul.f32 0.5, %v1177
    %v1179 = vsub.f32 1.5, %v1178
    %v1180 = vmul.f32 %v1175, %v1179
    %vm1181 = vweird.f32 %v1164
    %vm1182 = vweird.f32 %v1175
    %vm1183 = vmor %vm1181, %vm1182
    %v1184 = vsel %vm1183, %v1175, %v1180
    %v1185 = vmul.f32 %v1153, %v1174
    %v1186 = vmul.f32 %v1154, %v1184
    %v1188 = vperm.slane %v1145, 0
    %v1190 = vmul.f32 %v1185, %v1188
    %v1191 = vmul.f32 %v1186, %v1188
    %v1193 = vperm.slane %v1146, 0
    %v1195 = vadd.f32 %v1190, %v1193
    %v1196 = vadd.f32 %v1191, %v1193
    %v1197 = vpack.c.bf16 %v1196, %v1195
    %s1198 = scalar_lea.vmem [#allocation2], 192
    %v1199 = vld [vmem:[%s1198] sm:$0xff]
    %v1200 = vld [vmem:[%s1198 + $0x8] sm:$0xf]
    %v1201 = vld [vmem:[%s1198 + $0xc] sm:$0xff]
    %v1202 = vld [vmem:[%s1198 + $0x14] sm:$0xf]
    %v1203 = vld [vmem:[%s1198 + $0x18] sm:$0xff]
    %v1204 = vld [vmem:[%s1198 + $0x20] sm:$0xf]
    %v1205 = vld [vmem:[%s1198 + $0x24] sm:$0xff]
    %v1206 = vld [vmem:[%s1198 + $0x2c] sm:$0xf]
    %v1207 = vld [vmem:[%s1198 + $0x30] sm:$0xff]
    %v1208 = vld [vmem:[%s1198 + $0x38] sm:$0xf]
    %v1209 = vld [vmem:[%s1198 + $0x3c] sm:$0xff]
    %v1210 = vld [vmem:[%s1198 + $0x44] sm:$0xf]
    %v1211 = vld [vmem:[%s1198 + $0x48] sm:$0xff]
    %v1212 = vld [vmem:[%s1198 + $0x50] sm:$0xf]
    %v1213 = vld [vmem:[%s1198 + $0x54] sm:$0xff]
    %v1214 = vld [vmem:[%s1198 + $0x5c] sm:$0xf]
    %v1215 = vld [vmem:[%s1198 + $0x60] sm:$0xff]
    %v1216 = vld [vmem:[%s1198 + $0x68] sm:$0xf]
    %v1217 = vld [vmem:[%s1198 + $0x6c] sm:$0xff]
    %v1218 = vld [vmem:[%s1198 + $0x74] sm:$0xf]
    %v1219 = vld [vmem:[%s1198 + $0x78] sm:$0xff]
    %v1220 = vld [vmem:[%s1198 + $0x80] sm:$0xf]
    %v1221 = vld [vmem:[%s1198 + $0x84] sm:$0xff]
    %v1222 = vld [vmem:[%s1198 + $0x8c] sm:$0xf]
    %v1223 = vld [vmem:[%s1198 + $0x90] sm:$0xff]
    %v1224 = vld [vmem:[%s1198 + $0x98] sm:$0xf]
    %v1225 = vld [vmem:[%s1198 + $0x9c] sm:$0xff]
    %v1226 = vld [vmem:[%s1198 + $0xa4] sm:$0xf]
    %v1227 = vld [vmem:[%s1198 + $0xa8] sm:$0xff]
    %v1228 = vld [vmem:[%s1198 + $0xb0] sm:$0xf]
    %v1229 = vld [vmem:[%s1198 + $0xb4] sm:$0xff]
    %v1230 = vld [vmem:[%s1198 + $0xbc] sm:$0xf]
    %s1231 = scalar_lea.vmem %s5, 3
    %v1232 = vld [vmem:[%s1231] sm:$0x7]
    %v1234 = vperm.slane %v1232, 0
    %v1235 = vperm.slane %v1232, 1
    %v1236 = vperm.slane %v1232, 2
    %v1272 = vunpack.c.l.b16 %v1199
    %v1273 = vunpack.c.h.b16 %v1199
    %v1274 = vunpack.c.l.b16 %v1200
    %v1275 = vunpack.c.l.b16 %v1201
    %v1276 = vunpack.c.h.b16 %v1201
    %v1277 = vunpack.c.l.b16 %v1202
    %v1278 = vunpack.c.l.b16 %v1203
    %v1279 = vunpack.c.h.b16 %v1203
    %v1280 = vunpack.c.l.b16 %v1204
    %v1281 = vunpack.c.l.b16 %v1205
    %v1282 = vunpack.c.h.b16 %v1205
    %v1283 = vunpack.c.l.b16 %v1206
    %v1284 = vunpack.c.l.b16 %v1207
    %v1285 = vunpack.c.h.b16 %v1207
    %v1286 = vunpack.c.l.b16 %v1208
    %v1287 = vunpack.c.l.b16 %v1209
    %v1288 = vunpack.c.h.b16 %v1209
    %v1289 = vunpack.c.l.b16 %v1210
    %v1290 = vunpack.c.l.b16 %v1211
    %v1291 = vunpack.c.h.b16 %v1211
    %v1292 = vunpack.c.l.b16 %v1212
    %v1293 = vunpack.c.l.b16 %v1213
    %v1294 = vunpack.c.h.b16 %v1213
    %v1295 = vunpack.c.l.b16 %v1214
    %v1296 = vunpack.c.l.b16 %v1215
    %v1297 = vunpack.c.h.b16 %v1215
    %v1298 = vunpack.c.l.b16 %v1216
    %v1299 = vunpack.c.l.b16 %v1217
    %v1300 = vunpack.c.h.b16 %v1217
    %v1301 = vunpack.c.l.b16 %v1218
    %v1302 = vunpack.c.l.b16 %v1219
    %v1303 = vunpack.c.h.b16 %v1219
    %v1304 = vunpack.c.l.b16 %v1220
    %v1305 = vunpack.c.l.b16 %v1221
    %v1306 = vunpack.c.h.b16 %v1221
    %v1307 = vunpack.c.l.b16 %v1222
    %v1308 = vunpack.c.l.b16 %v1223
    %v1309 = vunpack.c.h.b16 %v1223
    %v1310 = vunpack.c.l.b16 %v1224
    %v1311 = vunpack.c.l.b16 %v1225
    %v1312 = vunpack.c.h.b16 %v1225
    %v1313 = vunpack.c.l.b16 %v1226
    %v1314 = vunpack.c.l.b16 %v1227
    %v1315 = vunpack.c.h.b16 %v1227
    %v1316 = vunpack.c.l.b16 %v1228
    %v1317 = vunpack.c.l.b16 %v1229
    %v1318 = vunpack.c.h.b16 %v1229
    %v1319 = vunpack.c.l.b16 %v1230
    %v1320 = vpack.c.b16 %v1275, %v1272
    %v1321 = vpack.c.b16 %v1276, %v1273
    %v1322 = vpack.c.b16 %v1277, %v1274
    %v1323 = vpack.c.b16 %v1281, %v1278
    %v1324 = vpack.c.b16 %v1282, %v1279
    %v1325 = vpack.c.b16 %v1283, %v1280
    %v1326 = vpack.c.b16 %v1287, %v1284
    %v1327 = vpack.c.b16 %v1288, %v1285
    %v1328 = vpack.c.b16 %v1289, %v1286
    %v1329 = vpack.c.b16 %v1293, %v1290
    %v1330 = vpack.c.b16 %v1294, %v1291
    %v1331 = vpack.c.b16 %v1295, %v1292
    %v1332 = vpack.c.b16 %v1299, %v1296
    %v1333 = vpack.c.b16 %v1300, %v1297
    %v1334 = vpack.c.b16 %v1301, %v1298
    %v1335 = vpack.c.b16 %v1305, %v1302
    %v1336 = vpack.c.b16 %v1306, %v1303
    %v1337 = vpack.c.b16 %v1307, %v1304
    %v1338 = vpack.c.b16 %v1311, %v1308
    %v1339 = vpack.c.b16 %v1312, %v1309
    %v1340 = vpack.c.b16 %v1313, %v1310
    %v1341 = vpack.c.b16 %v1317, %v1314
    %v1342 = vpack.c.b16 %v1318, %v1315
    %v1343 = vpack.c.b16 %v1319, %v1316
    %1368 = vmatpush.bf16.msra.mxu0 %v1341
    %1369 = vmatpush.bf16.msra.mxu0 %v1338
    %1370 = vmatpush.bf16.msra.mxu0 %v1335
    %1371 = vmatpush.bf16.msra.mxu0 %v1332
    %1372 = vmatpush.bf16.msra.mxu0 %v1329
    %1373 = vmatpush.bf16.msra.mxu0 %v1326
    %1374 = vmatpush.bf16.msra.mxu0 %v1323
    %1375 = vmatpush.bf16.msra.mxu0 %v1320
    %1376 = vmatmul.bf16.gmra.mxu0 %v1197
    %v1377 = vpop.f32.mrf.mxu0
    %v1378 = vadd.f32 %v1234, %v1377
    %v1379 = vpop.f32.mrf.mxu0
    %v1380 = vadd.f32 %v1234, %v1379
    %1381 = vdwg.mxu0
    %1382 = vmatpush.bf16.msra.mxu0 %v1342
    %1383 = vmatpush.bf16.msra.mxu0 %v1339
    %1384 = vmatpush.bf16.msra.mxu0 %v1336
    %1385 = vmatpush.bf16.msra.mxu0 %v1333
    %1386 = vmatpush.bf16.msra.mxu0 %v1330
    %1387 = vmatpush.bf16.msra.mxu0 %v1327
    %1388 = vmatpush.bf16.msra.mxu0 %v1324
    %1389 = vmatpush.bf16.msra.mxu0 %v1321
    %1390 = vmatmul.bf16.gmra.mxu0 %v1197
    %v1391 = vpop.f32.mrf.mxu0
    %v1392 = vadd.f32 %v1235, %v1391
    %v1393 = vpop.f32.mrf.mxu0
    %v1394 = vadd.f32 %v1235, %v1393
    %1395 = vdwg.mxu0
    %1396 = vmatpush.bf16.msra.mxu0 %v1343
    %1397 = vmatpush.bf16.msra.mxu0 %v1340
    %1398 = vmatpush.bf16.msra.mxu0 %v1337
    %1399 = vmatpush.bf16.msra.mxu0 %v1334
    %1400 = vmatpush.bf16.msra.mxu0 %v1331
    %1401 = vmatpush.bf16.msra.mxu0 %v1328
    %1402 = vmatpush.bf16.msra.mxu0 %v1325
    %1403 = vmatpush.bf16.msra.mxu0 %v1322
    %1404 = vmatmul.bf16.gmra.mxu0 %v1197
    %v1405 = vpop.f32.mrf.mxu0
    %v1406 = vadd.f32 %v1236, %v1405
    %v1407 = vpop.f32.mrf.mxu0
    %v1408 = vadd.f32 %v1236, %v1407
    %1409 = vdwg.mxu0
    %s1410 = scalar_lea.vmem %s6, 64
    %v1411 = vld [vmem:[%s1410] sm:$0xf]
    %v1412 = vld [vmem:[%s1410 + $0x4] sm:$0xf]
    %v1413 = vld [vmem:[%s1410 + $0x8] sm:$0xf]
    %v1414 = vld [vmem:[%s1410 + $0xc] sm:$0xf]
    %v1415 = vld [vmem:[%s1410 + $0x10] sm:$0xf]
    %v1416 = vld [vmem:[%s1410 + $0x14] sm:$0xf]
    %v1417 = vld [vmem:[%s1410 + $0x18] sm:$0xf]
    %v1418 = vld [vmem:[%s1410 + $0x1c] sm:$0xf]
    %v1419 = vld [vmem:[%s1410 + $0x20] sm:$0xf]
    %v1420 = vld [vmem:[%s1410 + $0x24] sm:$0xf]
    %v1421 = vld [vmem:[%s1410 + $0x28] sm:$0xf]
    %v1422 = vld [vmem:[%s1410 + $0x2c] sm:$0xf]
    %v1423 = vld [vmem:[%s1410 + $0x30] sm:$0xf]
    %v1424 = vld [vmem:[%s1410 + $0x34] sm:$0xf]
    %v1425 = vld [vmem:[%s1410 + $0x38] sm:$0xf]
    %v1426 = vld [vmem:[%s1410 + $0x3c] sm:$0xf]
    %v1428 = vsel %vm402, %v1378, 0
    %v1431 = vsel %vm402, %v1392, 0
    %1433 = vmatpush.xpose.msra.mxu0 0.0
    %1434 = vmatpush.xpose.msra.mxu0 0.0
    %1435 = vmatpush.xpose.msra.mxu0 0.0
    %1436 = vmatpush.xpose.msra.mxu0 0.0
    %1437 = vmatpush.xpose.msra.mxu0 0.0
    %1438 = vmatpush.xpose.msra.mxu0 0.0
    %1439 = vmatpush.xpose.msra.mxu0 0.0
    %1440 = vmatpush.xpose.msra.mxu0 0.0
    %1441 = vmatpush.xpose.msra.mxu0 0.0
    %1442 = vmatpush.xpose.msra.mxu0 0.0
    %1443 = vmatpush.xpose.msra.mxu0 0.0
    %1444 = vmatpush.xpose.msra.mxu0 0.0
    %1445 = vmatpush.xpose.msra.mxu0 0.0
    %1446 = vmatpush.xpose.msra.mxu0 0.0
    %1447 = vmatpush.xpose.msra.mxu0 0.0
    %1448 = vmatpush.xpose.msra.mxu0 %v1431
    %1449 = vmatmul.f32.gmra.mxu0 %v1428
    %v1450 = vpop.f32.mrf.mxu0
    %v1451 = vadd.f32 0.0, %v1450
    %1452 = vdwg.mxu0
    %v1454 = vsel %vm402, %v1380, 0
    %v1457 = vsel %vm402, %v1394, 0
    %1459 = vmatpush.xpose.msra.mxu0 0.0
    %1460 = vmatpush.xpose.msra.mxu0 0.0
    %1461 = vmatpush.xpose.msra.mxu0 0.0
    %1462 = vmatpush.xpose.msra.mxu0 0.0
    %1463 = vmatpush.xpose.msra.mxu0 0.0
    %1464 = vmatpush.xpose.msra.mxu0 0.0
    %1465 = vmatpush.xpose.msra.mxu0 0.0
    %1466 = vmatpush.xpose.msra.mxu0 0.0
    %1467 = vmatpush.xpose.msra.mxu0 0.0
    %1468 = vmatpush.xpose.msra.mxu0 0.0
    %1469 = vmatpush.xpose.msra.mxu0 0.0
    %1470 = vmatpush.xpose.msra.mxu0 0.0
    %1471 = vmatpush.xpose.msra.mxu0 0.0
    %1472 = vmatpush.xpose.msra.mxu0 0.0
    %1473 = vmatpush.xpose.msra.mxu0 0.0
    %1474 = vmatpush.xpose.msra.mxu0 %v1457
    %1475 = vmatmul.f32.gmra.mxu0 %v1454
    %v1476 = vpop.f32.mrf.mxu0
    %v1477 = vadd.f32 0.0, %v1476
    %1478 = vdwg.mxu0
    %v1479 = vmul.f32 %v1451, 0.125
    %v1480 = vmul.f32 %v1477, 0.125
    %v1481 = vadd.f32 %v1479, %v459
    %v1482 = vadd.f32 %v1480, %v460
    %v1483 = vsel %vm465, %v1481, -inf
    %1484 = vmax.xlane.f32.xlu0 %v1483
    %v1485 = vpop.xlane.xlu0 %1484
    %v1486 = vsel %vm465, %v1482, -inf
    %1487 = vmax.xlane.f32.xlu0 %v1486
    %v1488 = vpop.xlane.xlu0 %1487
    %v1489 = vsub.f32 %v1481, %v1485
    %v1490 = vsub.f32 %v1482, %v1488
    %v1491 = vmul.f32 %v1489, 1.442695
    %v1492 = vpow.pop %v1491
    %v1493 = vmul.f32 %v1490, 1.442695
    %v1494 = vpow.pop %v1493
    %v1495 = vsel %vm465, %v1492, 0.0
    %1496 = vadd.xlane.f32.xlu0 %v1495
    %v1497 = vpop.xlane.xlu0 %1496
    %v1498 = vsel %vm465, %v1494, 0.0
    %1499 = vadd.xlane.f32.xlu0 %v1498
    %v1500 = vpop.xlane.xlu0 %1499
    %v1501 = vrcp.pop %v1497
    %v1502 = vrcp.pop %v1500
    %v1503 = vmul.f32 %v1492, %v1501
    %v1504 = vmul.f32 %v1494, %v1502
    %v1506 = vsel %vm465, %v1503, 0
    %1508 = vmatpush.msra.mxu0 0.0
    %1509 = vmatpush.msra.mxu0 0.0
    %1510 = vmatpush.msra.mxu0 0.0
    %1511 = vmatpush.msra.mxu0 0.0
    %1512 = vmatpush.msra.mxu0 0.0
    %1513 = vmatpush.msra.mxu0 0.0
    %1514 = vmatpush.msra.mxu0 0.0
    %1515 = vmatpush.msra.mxu0 0.0
    %1516 = vmatpush.msra.mxu0 0.0
    %1517 = vmatpush.msra.mxu0 0.0
    %1518 = vmatpush.msra.mxu0 0.0
    %1519 = vmatpush.msra.mxu0 0.0
    %1520 = vmatpush.msra.mxu0 0.0
    %1521 = vmatpush.msra.mxu0 0.0
    %1522 = vmatpush.msra.mxu0 0.0
    %1523 = vmatpush.msra.mxu0 %v1406
    %1524 = vmatmul.f32.gmra.mxu0 %v1506
    %v1525 = vpop.f32.mrf.mxu0
    %v1526 = vadd.f32 0.0, %v1525
    %1527 = vdwg.mxu0
    %v1529 = vsel %vm465, %v1504, 0
    %1531 = vmatpush.msra.mxu0 0.0
    %1532 = vmatpush.msra.mxu0 0.0
    %1533 = vmatpush.msra.mxu0 0.0
    %1534 = vmatpush.msra.mxu0 0.0
    %1535 = vmatpush.msra.mxu0 0.0
    %1536 = vmatpush.msra.mxu0 0.0
    %1537 = vmatpush.msra.mxu0 0.0
    %1538 = vmatpush.msra.mxu0 0.0
    %1539 = vmatpush.msra.mxu0 0.0
    %1540 = vmatpush.msra.mxu0 0.0
    %1541 = vmatpush.msra.mxu0 0.0
    %1542 = vmatpush.msra.mxu0 0.0
    %1543 = vmatpush.msra.mxu0 0.0
    %1544 = vmatpush.msra.mxu0 0.0
    %1545 = vmatpush.msra.mxu0 0.0
    %1546 = vmatpush.msra.mxu0 %v1408
    %1547 = vmatmul.f32.gmra.mxu0 %v1529
    %v1548 = vpop.f32.mrf.mxu0
    %v1549 = vadd.f32 0.0, %v1548
    %1550 = vdwg.mxu0
    %v1551 = vpack.c.bf16 %v1549, %v1526
    %1552 = vrot.lane.b32.xlu0 %v1378, 64
    %v1553 = vpop.permute.xlu0 %1552
    %1554 = vrot.lane.b32.xlu0 %v1392, 64
    %v1555 = vpop.permute.xlu0 %1554
    %v1556 = vsel %vm402, %v1553, 0
    %v1558 = vsel %vm402, %v1555, 0
    %1560 = vmatpush.xpose.msra.mxu0 0.0
    %1561 = vmatpush.xpose.msra.mxu0 0.0
    %1562 = vmatpush.xpose.msra.mxu0 0.0
    %1563 = vmatpush.xpose.msra.mxu0 0.0
    %1564 = vmatpush.xpose.msra.mxu0 0.0
    %1565 = vmatpush.xpose.msra.mxu0 0.0
    %1566 = vmatpush.xpose.msra.mxu0 0.0
    %1567 = vmatpush.xpose.msra.mxu0 0.0
    %1568 = vmatpush.xpose.msra.mxu0 0.0
    %1569 = vmatpush.xpose.msra.mxu0 0.0
    %1570 = vmatpush.xpose.msra.mxu0 0.0
    %1571 = vmatpush.xpose.msra.mxu0 0.0
    %1572 = vmatpush.xpose.msra.mxu0 0.0
    %1573 = vmatpush.xpose.msra.mxu0 0.0
    %1574 = vmatpush.xpose.msra.mxu0 0.0
    %1575 = vmatpush.xpose.msra.mxu0 %v1558
    %1576 = vmatmul.f32.gmra.mxu0 %v1556
    %v1577 = vpop.f32.mrf.mxu0
    %v1578 = vadd.f32 0.0, %v1577
    %1579 = vdwg.mxu0
    %1580 = vrot.lane.b32.xlu0 %v1380, 64
    %v1581 = vpop.permute.xlu0 %1580
    %1582 = vrot.lane.b32.xlu0 %v1394, 64
    %v1583 = vpop.permute.xlu0 %1582
    %v1584 = vsel %vm402, %v1581, 0
    %v1586 = vsel %vm402, %v1583, 0
    %1588 = vmatpush.xpose.msra.mxu0 0.0
    %1589 = vmatpush.xpose.msra.mxu0 0.0
    %1590 = vmatpush.xpose.msra.mxu0 0.0
    %1591 = vmatpush.xpose.msra.mxu0 0.0
    %1592 = vmatpush.xpose.msra.mxu0 0.0
    %1593 = vmatpush.xpose.msra.mxu0 0.0
    %1594 = vmatpush.xpose.msra.mxu0 0.0
    %1595 = vmatpush.xpose.msra.mxu0 0.0
    %1596 = vmatpush.xpose.msra.mxu0 0.0
    %1597 = vmatpush.xpose.msra.mxu0 0.0
    %1598 = vmatpush.xpose.msra.mxu0 0.0
    %1599 = vmatpush.xpose.msra.mxu0 0.0
    %1600 = vmatpush.xpose.msra.mxu0 0.0
    %1601 = vmatpush.xpose.msra.mxu0 0.0
    %1602 = vmatpush.xpose.msra.mxu0 0.0
    %1603 = vmatpush.xpose.msra.mxu0 %v1586
    %1604 = vmatmul.f32.gmra.mxu0 %v1584
    %v1605 = vpop.f32.mrf.mxu0
    %v1606 = vadd.f32 0.0, %v1605
    %1607 = vdwg.mxu0
    %v1608 = vmul.f32 %v1578, 0.125
    %v1609 = vmul.f32 %v1606, 0.125
    %v1610 = vadd.f32 %v1608, %v459
    %v1611 = vadd.f32 %v1609, %v460
    %v1612 = vsel %vm465, %v1610, -inf
    %1613 = vmax.xlane.f32.xlu0 %v1612
    %v1614 = vpop.xlane.xlu0 %1613
    %v1615 = vsel %vm465, %v1611, -inf
    %1616 = vmax.xlane.f32.xlu0 %v1615
    %v1617 = vpop.xlane.xlu0 %1616
    %v1618 = vsub.f32 %v1610, %v1614
    %v1619 = vsub.f32 %v1611, %v1617
    %v1620 = vmul.f32 %v1618, 1.442695
    %v1621 = vpow.pop %v1620
    %v1622 = vmul.f32 %v1619, 1.442695
    %v1623 = vpow.pop %v1622
    %v1624 = vsel %vm465, %v1621, 0.0
    %1625 = vadd.xlane.f32.xlu0 %v1624
    %v1626 = vpop.xlane.xlu0 %1625
    %v1627 = vsel %vm465, %v1623, 0.0
    %1628 = vadd.xlane.f32.xlu0 %v1627
    %v1629 = vpop.xlane.xlu0 %1628
    %v1630 = vrcp.pop %v1626
    %v1631 = vrcp.pop %v1629
    %v1632 = vmul.f32 %v1621, %v1630
    %v1633 = vmul.f32 %v1623, %v1631
    %1635 = vrot.lane.b32.xlu0 %v1406, 64
    %v1636 = vpop.permute.xlu0 %1635
    %v1639 = vsel %vm465, %v1632, 0
    %1641 = vmatpush.msra.mxu0 0.0
    %1642 = vmatpush.msra.mxu0 0.0
    %1643 = vmatpush.msra.mxu0 0.0
    %1644 = vmatpush.msra.mxu0 0.0
    %1645 = vmatpush.msra.mxu0 0.0
    %1646 = vmatpush.msra.mxu0 0.0
    %1647 = vmatpush.msra.mxu0 0.0
    %1648 = vmatpush.msra.mxu0 0.0
    %1649 = vmatpush.msra.mxu0 0.0
    %1650 = vmatpush.msra.mxu0 0.0
    %1651 = vmatpush.msra.mxu0 0.0
    %1652 = vmatpush.msra.mxu0 0.0
    %1653 = vmatpush.msra.mxu0 0.0
    %1654 = vmatpush.msra.mxu0 0.0
    %1655 = vmatpush.msra.mxu0 0.0
    %1656 = vmatpush.msra.mxu0 %v1636
    %1657 = vmatmul.f32.gmra.mxu0 %v1639
    %v1658 = vpop.f32.mrf.mxu0
    %v1659 = vadd.f32 0.0, %v1658
    %1660 = vdwg.mxu0
    %1662 = vrot.lane.b32.xlu0 %v1408, 64
    %v1663 = vpop.permute.xlu0 %1662
    %v1666 = vsel %vm465, %v1633, 0
    %1668 = vmatpush.msra.mxu0 0.0
    %1669 = vmatpush.msra.mxu0 0.0
    %1670 = vmatpush.msra.mxu0 0.0
    %1671 = vmatpush.msra.mxu0 0.0
    %1672 = vmatpush.msra.mxu0 0.0
    %1673 = vmatpush.msra.mxu0 0.0
    %1674 = vmatpush.msra.mxu0 0.0
    %1675 = vmatpush.msra.mxu0 0.0
    %1676 = vmatpush.msra.mxu0 0.0
    %1677 = vmatpush.msra.mxu0 0.0
    %1678 = vmatpush.msra.mxu0 0.0
    %1679 = vmatpush.msra.mxu0 0.0
    %1680 = vmatpush.msra.mxu0 0.0
    %1681 = vmatpush.msra.mxu0 0.0
    %1682 = vmatpush.msra.mxu0 0.0
    %1683 = vmatpush.msra.mxu0 %v1663
    %1684 = vmatmul.f32.gmra.mxu0 %v1666
    %v1685 = vpop.f32.mrf.mxu0
    %v1686 = vadd.f32 0.0, %v1685
    %1687 = vdwg.mxu0
    %v1688 = vpack.c.bf16 %v1686, %v1659
    %v1697 = vunpack.c.l.b16 %v1419
    %v1698 = vunpack.c.l.b16 %v1420
    %v1699 = vunpack.c.l.b16 %v1421
    %v1700 = vunpack.c.l.b16 %v1422
    %v1701 = vunpack.c.l.b16 %v1423
    %v1702 = vunpack.c.l.b16 %v1424
    %v1703 = vunpack.c.l.b16 %v1425
    %v1704 = vunpack.c.l.b16 %v1426
    %v1705 = vpack.c.b16 %v1698, %v1697
    %v1706 = vpack.c.b16 %v1700, %v1699
    %v1707 = vpack.c.b16 %v1702, %v1701
    %v1708 = vpack.c.b16 %v1704, %v1703
    %v1714 = vsel %vm402, %v1688, 0
    %1716 = vmatpush.bf16.msra.mxu0 0
    %1717 = vmatpush.bf16.msra.mxu0 0
    %1718 = vmatpush.bf16.msra.mxu0 0
    %1719 = vmatpush.bf16.msra.mxu0 0
    %1720 = vmatpush.bf16.msra.mxu0 %v1708
    %1721 = vmatpush.bf16.msra.mxu0 %v1707
    %1722 = vmatpush.bf16.msra.mxu0 %v1706
    %1723 = vmatpush.bf16.msra.mxu0 %v1705
    %1724 = vmatmul.bf16.gmra.mxu0 %v1714
    %v1725 = vpop.f32.mrf.mxu0
    %v1726 = vadd.f32 0.0, %v1725
    %v1727 = vpop.f32.mrf.mxu0
    %v1728 = vadd.f32 0.0, %v1727
    %1729 = vdwg.mxu0
    %v1738 = vunpack.c.l.b16 %v1411
    %v1739 = vunpack.c.l.b16 %v1412
    %v1740 = vunpack.c.l.b16 %v1413
    %v1741 = vunpack.c.l.b16 %v1414
    %v1742 = vunpack.c.l.b16 %v1415
    %v1743 = vunpack.c.l.b16 %v1416
    %v1744 = vunpack.c.l.b16 %v1417
    %v1745 = vunpack.c.l.b16 %v1418
    %v1746 = vpack.c.b16 %v1739, %v1738
    %v1747 = vpack.c.b16 %v1741, %v1740
    %v1748 = vpack.c.b16 %v1743, %v1742
    %v1749 = vpack.c.b16 %v1745, %v1744
    %v1755 = vsel %vm402, %v1551, 0
    %1757 = vmatpush.bf16.msra.mxu0 0
    %1758 = vmatpush.bf16.msra.mxu0 0
    %1759 = vmatpush.bf16.msra.mxu0 0
    %1760 = vmatpush.bf16.msra.mxu0 0
    %1761 = vmatpush.bf16.msra.mxu0 %v1749
    %1762 = vmatpush.bf16.msra.mxu0 %v1748
    %1763 = vmatpush.bf16.msra.mxu0 %v1747
    %1764 = vmatpush.bf16.msra.mxu0 %v1746
    %1765 = vmatmul.bf16.gmra.mxu0 %v1755
    %v1766 = vpop.f32.mrf.mxu0
    %v1767 = vadd.f32 %v1726, %v1766
    %v1768 = vpop.f32.mrf.mxu0
    %v1769 = vadd.f32 %v1728, %v1768
    %1770 = vdwg.mxu0
    %s1771 = scalar_lea.vmem %s7, 1
    %v1772 = vld [vmem:[%s1771] sm:$0x1]
    %v1774 = vperm.slane %v1772, 0
    %v1776 = vadd.f32 %v1767, %v1774
    %v1777 = vadd.f32 %v1769, %v1774
    %v1778 = vadd.f32 %v1195, %v1776
    %v1779 = vadd.f32 %v1196, %v1777
    %s1780 = scalar_lea.vmem %s8, 1
    %v1781 = vld [vmem:[%s1780] sm:$0x1]
    %s1782 = scalar_lea.vmem %s9, 1
    %v1783 = vld [vmem:[%s1782] sm:$0x1]
    %1784 = vadd.xlane.f32.xlu0 %v1778
    %v1785 = vpop.xlane.xlu0 %1784
    %1786 = vadd.xlane.f32.xlu0 %v1779
    %v1787 = vpop.xlane.xlu0 %1786
    %v1788 = vmul.f32 %v1785, %v122
    %v1789 = vmul.f32 %v1787, %v122
    %v1790 = vsub.f32 %v1778, %v1788
    %v1791 = vsub.f32 %v1779, %v1789
    %v1792 = vmul.f32 %v1790, %v1790
    %v1793 = vmul.f32 %v1791, %v1791
    %1794 = vadd.xlane.f32.xlu0 %v1792
    %v1795 = vpop.xlane.xlu0 %1794
    %1796 = vadd.xlane.f32.xlu0 %v1793
    %v1797 = vpop.xlane.xlu0 %1796
    %v1798 = vmul.f32 %v1795, %v122
    %v1799 = vmul.f32 %v1797, %v122
    %v1800 = vadd.f32 %v1798, 1e-12
    %v1801 = vadd.f32 %v1799, 1e-12
    %v1802 = vrsqrt.pop %v1800
    %v1803 = vmul.f32 %v1802, %v1800
    %v1804 = vmul.f32 %v1803, %v1802
    %v1805 = vmul.f32 0.5, %v1804
    %v1806 = vsub.f32 1.5, %v1805
    %v1807 = vmul.f32 %v1802, %v1806
    %vm1808 = vweird.f32 %v1800
    %vm1809 = vweird.f32 %v1802
    %vm1810 = vmor %vm1808, %vm1809
    %v1811 = vsel %vm1810, %v1802, %v1807
    %v1812 = vrsqrt.pop %v1801
    %v1813 = vmul.f32 %v1812, %v1801
    %v1814 = vmul.f32 %v1813, %v1812
    %v1815 = vmul.f32 0.5, %v1814
    %v1816 = vsub.f32 1.5, %v1815
    %v1817 = vmul.f32 %v1812, %v1816
    %vm1818 = vweird.f32 %v1801
    %vm1819 = vweird.f32 %v1812
    %vm1820 = vmor %vm1818, %vm1819
    %v1821 = vsel %vm1820, %v1812, %v1817
    %v1822 = vmul.f32 %v1790, %v1811
    %v1823 = vmul.f32 %v1791, %v1821
    %v1825 = vperm.slane %v1781, 0
    %v1827 = vmul.f32 %v1822, %v1825
    %v1828 = vmul.f32 %v1823, %v1825
    %v1830 = vperm.slane %v1783, 0
    %v1832 = vadd.f32 %v1827, %v1830
    %v1833 = vadd.f32 %v1828, %v1830
    %v1834 = vpack.c.bf16 %v1833, %v1832
    %s1835 = scalar_lea.vmem [#allocation5], 128
    %v1836 = vld [vmem:[%s1835] sm:$0xff]
    %v1837 = vld [vmem:[%s1835 + $0x8] sm:$0xff]
    %v1838 = vld [vmem:[%s1835 + $0x10] sm:$0xff]
    %v1839 = vld [vmem:[%s1835 + $0x18] sm:$0xff]
    %v1840 = vld [vmem:[%s1835 + $0x20] sm:$0xff]
    %v1841 = vld [vmem:[%s1835 + $0x28] sm:$0xff]
    %v1842 = vld [vmem:[%s1835 + $0x30] sm:$0xff]
    %v1843 = vld [vmem:[%s1835 + $0x38] sm:$0xff]
    %v1844 = vld [vmem:[%s1835 + $0x40] sm:$0xff]
    %v1845 = vld [vmem:[%s1835 + $0x48] sm:$0xff]
    %v1846 = vld [vmem:[%s1835 + $0x50] sm:$0xff]
    %v1847 = vld [vmem:[%s1835 + $0x58] sm:$0xff]
    %v1848 = vld [vmem:[%s1835 + $0x60] sm:$0xff]
    %v1849 = vld [vmem:[%s1835 + $0x68] sm:$0xff]
    %v1850 = vld [vmem:[%s1835 + $0x70] sm:$0xff]
    %v1851 = vld [vmem:[%s1835 + $0x78] sm:$0xff]
    %s1852 = scalar_lea.vmem %s11, 2
    %v1853 = vld [vmem:[%s1852] sm:$0x3]
    %v1855 = vperm.slane %v1853, 0
    %v1856 = vperm.slane %v1853, 1
    %v1875 = vunpack.c.l.b16 %v1836
    %v1876 = vunpack.c.h.b16 %v1836
    %v1877 = vunpack.c.l.b16 %v1837
    %v1878 = vunpack.c.h.b16 %v1837
    %v1879 = vunpack.c.l.b16 %v1838
    %v1880 = vunpack.c.h.b16 %v1838
    %v1881 = vunpack.c.l.b16 %v1839
    %v1882 = vunpack.c.h.b16 %v1839
    %v1883 = vunpack.c.l.b16 %v1840
    %v1884 = vunpack.c.h.b16 %v1840
    %v1885 = vunpack.c.l.b16 %v1841
    %v1886 = vunpack.c.h.b16 %v1841
    %v1887 = vunpack.c.l.b16 %v1842
    %v1888 = vunpack.c.h.b16 %v1842
    %v1889 = vunpack.c.l.b16 %v1843
    %v1890 = vunpack.c.h.b16 %v1843
    %v1891 = vunpack.c.l.b16 %v1844
    %v1892 = vunpack.c.h.b16 %v1844
    %v1893 = vunpack.c.l.b16 %v1845
    %v1894 = vunpack.c.h.b16 %v1845
    %v1895 = vunpack.c.l.b16 %v1846
    %v1896 = vunpack.c.h.b16 %v1846
    %v1897 = vunpack.c.l.b16 %v1847
    %v1898 = vunpack.c.h.b16 %v1847
    %v1899 = vunpack.c.l.b16 %v1848
    %v1900 = vunpack.c.h.b16 %v1848
    %v1901 = vunpack.c.l.b16 %v1849
    %v1902 = vunpack.c.h.b16 %v1849
    %v1903 = vunpack.c.l.b16 %v1850
    %v1904 = vunpack.c.h.b16 %v1850
    %v1905 = vunpack.c.l.b16 %v1851
    %v1906 = vunpack.c.h.b16 %v1851
    %v1907 = vpack.c.b16 %v1877, %v1875
    %v1908 = vpack.c.b16 %v1878, %v1876
    %v1909 = vpack.c.b16 %v1881, %v1879
    %v1910 = vpack.c.b16 %v1882, %v1880
    %v1911 = vpack.c.b16 %v1885, %v1883
    %v1912 = vpack.c.b16 %v1886, %v1884
    %v1913 = vpack.c.b16 %v1889, %v1887
    %v1914 = vpack.c.b16 %v1890, %v1888
    %v1915 = vpack.c.b16 %v1893, %v1891
    %v1916 = vpack.c.b16 %v1894, %v1892
    %v1917 = vpack.c.b16 %v1897, %v1895
    %v1918 = vpack.c.b16 %v1898, %v1896
    %v1919 = vpack.c.b16 %v1901, %v1899
    %v1920 = vpack.c.b16 %v1902, %v1900
    %v1921 = vpack.c.b16 %v1905, %v1903
    %v1922 = vpack.c.b16 %v1906, %v1904
    %1939 = vmatpush.bf16.msra.mxu0 %v1921
    %1940 = vmatpush.bf16.msra.mxu0 %v1919
    %1941 = vmatpush.bf16.msra.mxu0 %v1917
    %1942 = vmatpush.bf16.msra.mxu0 %v1915
    %1943 = vmatpush.bf16.msra.mxu0 %v1913
    %1944 = vmatpush.bf16.msra.mxu0 %v1911
    %1945 = vmatpush.bf16.msra.mxu0 %v1909
    %1946 = vmatpush.bf16.msra.mxu0 %v1907
    %1947 = vmatmul.bf16.gmra.mxu0 %v1834
    %v1948 = vpop.f32.mrf.mxu0
    %v1949 = vadd.f32 %v1855, %v1948
    %v1950 = vpop.f32.mrf.mxu0
    %v1951 = vadd.f32 %v1855, %v1950
    %1952 = vdwg.mxu0
    %1953 = vmatpush.bf16.msra.mxu0 %v1922
    %1954 = vmatpush.bf16.msra.mxu0 %v1920
    %1955 = vmatpush.bf16.msra.mxu0 %v1918
    %1956 = vmatpush.bf16.msra.mxu0 %v1916
    %1957 = vmatpush.bf16.msra.mxu0 %v1914
    %1958 = vmatpush.bf16.msra.mxu0 %v1912
    %1959 = vmatpush.bf16.msra.mxu0 %v1910
    %1960 = vmatpush.bf16.msra.mxu0 %v1908
    %1961 = vmatmul.bf16.gmra.mxu0 %v1834
    %v1962 = vpop.f32.mrf.mxu0
    %v1963 = vadd.f32 %v1856, %v1962
    %v1964 = vpop.f32.mrf.mxu0
    %v1965 = vadd.f32 %v1856, %v1964
    %1966 = vdwg.mxu0
    %v1967 = vmul.f32 %v1949, 0.5
    %v1968 = vmul.f32 %v1963, 0.5
    %v1969 = vmul.f32 %v1951, 0.5
    %v1970 = vmul.f32 %v1965, 0.5
    %v1971 = vmul.f32 %v1949, 0.044715
    %v1972 = vmul.f32 %v1963, 0.044715
    %v1973 = vmul.f32 %v1951, 0.044715
    %v1974 = vmul.f32 %v1965, 0.044715
    %v1975 = vmul.f32 %v1971, %v1949
    %v1976 = vmul.f32 %v1972, %v1963
    %v1977 = vmul.f32 %v1973, %v1951
    %v1978 = vmul.f32 %v1974, %v1965
    %v1979 = vmul.f32 %v1975, %v1949
    %v1980 = vmul.f32 %v1976, %v1963
    %v1981 = vmul.f32 %v1977, %v1951
    %v1982 = vmul.f32 %v1978, %v1965
    %v1983 = vadd.f32 %v1949, %v1979
    %v1984 = vadd.f32 %v1963, %v1980
    %v1985 = vadd.f32 %v1951, %v1981
    %v1986 = vadd.f32 %v1965, %v1982
    %v1987 = vmul.f32 %v1983, 0.7978846
    %v1988 = vmul.f32 %v1984, 0.7978846
    %v1989 = vmul.f32 %v1985, 0.7978846
    %v1990 = vmul.f32 %v1986, 0.7978846
    %v1991 = vtanh.pop %v1987
    %v1992 = vtanh.pop %v1988
    %v1993 = vtanh.pop %v1989
    %v1994 = vtanh.pop %v1990
    %v1995 = vadd.f32 %v1991, 1.0
    %v1996 = vadd.f32 %v1992, 1.0
    %v1997 = vadd.f32 %v1993, 1.0
    %v1998 = vadd.f32 %v1994, 1.0
    %v1999 = vmul.f32 %v1967, %v1995
    %v2000 = vmul.f32 %v1968, %v1996
    %v2001 = vmul.f32 %v1969, %v1997
    %v2002 = vmul.f32 %v1970, %v1998
    %v2003 = vpack.c.bf16 %v2001, %v1999
    %v2004 = vpack.c.bf16 %v2002, %v2000
    %s2005 = scalar_lea.vmem [#allocation7], 128
    %v2006 = vld [vmem:[%s2005] sm:$0xf]
    %v2007 = vld [vmem:[%s2005 + $0x4] sm:$0xf]
    %v2008 = vld [vmem:[%s2005 + $0x8] sm:$0xf]
    %v2009 = vld [vmem:[%s2005 + $0xc] sm:$0xf]
    %v2010 = vld [vmem:[%s2005 + $0x10] sm:$0xf]
    %v2011 = vld [vmem:[%s2005 + $0x14] sm:$0xf]
    %v2012 = vld [vmem:[%s2005 + $0x18] sm:$0xf]
    %v2013 = vld [vmem:[%s2005 + $0x1c] sm:$0xf]
    %v2014 = vld [vmem:[%s2005 + $0x20] sm:$0xf]
    %v2015 = vld [vmem:[%s2005 + $0x24] sm:$0xf]
    %v2016 = vld [vmem:[%s2005 + $0x28] sm:$0xf]
    %v2017 = vld [vmem:[%s2005 + $0x2c] sm:$0xf]
    %v2018 = vld [vmem:[%s2005 + $0x30] sm:$0xf]
    %v2019 = vld [vmem:[%s2005 + $0x34] sm:$0xf]
    %v2020 = vld [vmem:[%s2005 + $0x38] sm:$0xf]
    %v2021 = vld [vmem:[%s2005 + $0x3c] sm:$0xf]
    %v2022 = vld [vmem:[%s2005 + $0x40] sm:$0xf]
    %v2023 = vld [vmem:[%s2005 + $0x44] sm:$0xf]
    %v2024 = vld [vmem:[%s2005 + $0x48] sm:$0xf]
    %v2025 = vld [vmem:[%s2005 + $0x4c] sm:$0xf]
    %v2026 = vld [vmem:[%s2005 + $0x50] sm:$0xf]
    %v2027 = vld [vmem:[%s2005 + $0x54] sm:$0xf]
    %v2028 = vld [vmem:[%s2005 + $0x58] sm:$0xf]
    %v2029 = vld [vmem:[%s2005 + $0x5c] sm:$0xf]
    %v2030 = vld [vmem:[%s2005 + $0x60] sm:$0xf]
    %v2031 = vld [vmem:[%s2005 + $0x64] sm:$0xf]
    %v2032 = vld [vmem:[%s2005 + $0x68] sm:$0xf]
    %v2033 = vld [vmem:[%s2005 + $0x6c] sm:$0xf]
    %v2034 = vld [vmem:[%s2005 + $0x70] sm:$0xf]
    %v2035 = vld [vmem:[%s2005 + $0x74] sm:$0xf]
    %v2036 = vld [vmem:[%s2005 + $0x78] sm:$0xf]
    %v2037 = vld [vmem:[%s2005 + $0x7c] sm:$0xf]
    %s2038 = scalar_lea.vmem %s13, 1
    %v2039 = vld [vmem:[%s2038] sm:$0x1]
    %v2041 = vperm.slane %v2039, 0
    %v2075 = vunpack.c.l.b16 %v2006
    %v2076 = vunpack.c.l.b16 %v2007
    %v2077 = vunpack.c.l.b16 %v2008
    %v2078 = vunpack.c.l.b16 %v2009
    %v2079 = vunpack.c.l.b16 %v2010
    %v2080 = vunpack.c.l.b16 %v2011
    %v2081 = vunpack.c.l.b16 %v2012
    %v2082 = vunpack.c.l.b16 %v2013
    %v2083 = vunpack.c.l.b16 %v2014
    %v2084 = vunpack.c.l.b16 %v2015
    %v2085 = vunpack.c.l.b16 %v2016
    %v2086 = vunpack.c.l.b16 %v2017
    %v2087 = vunpack.c.l.b16 %v2018
    %v2088 = vunpack.c.l.b16 %v2019
    %v2089 = vunpack.c.l.b16 %v2020
    %v2090 = vunpack.c.l.b16 %v2021
    %v2091 = vunpack.c.l.b16 %v2022
    %v2092 = vunpack.c.l.b16 %v2023
    %v2093 = vunpack.c.l.b16 %v2024
    %v2094 = vunpack.c.l.b16 %v2025
    %v2095 = vunpack.c.l.b16 %v2026
    %v2096 = vunpack.c.l.b16 %v2027
    %v2097 = vunpack.c.l.b16 %v2028
    %v2098 = vunpack.c.l.b16 %v2029
    %v2099 = vunpack.c.l.b16 %v2030
    %v2100 = vunpack.c.l.b16 %v2031
    %v2101 = vunpack.c.l.b16 %v2032
    %v2102 = vunpack.c.l.b16 %v2033
    %v2103 = vunpack.c.l.b16 %v2034
    %v2104 = vunpack.c.l.b16 %v2035
    %v2105 = vunpack.c.l.b16 %v2036
    %v2106 = vunpack.c.l.b16 %v2037
    %v2107 = vpack.c.b16 %v2076, %v2075
    %v2108 = vpack.c.b16 %v2078, %v2077
    %v2109 = vpack.c.b16 %v2080, %v2079
    %v2110 = vpack.c.b16 %v2082, %v2081
    %v2111 = vpack.c.b16 %v2084, %v2083
    %v2112 = vpack.c.b16 %v2086, %v2085
    %v2113 = vpack.c.b16 %v2088, %v2087
    %v2114 = vpack.c.b16 %v2090, %v2089
    %v2115 = vpack.c.b16 %v2092, %v2091
    %v2116 = vpack.c.b16 %v2094, %v2093
    %v2117 = vpack.c.b16 %v2096, %v2095
    %v2118 = vpack.c.b16 %v2098, %v2097
    %v2119 = vpack.c.b16 %v2100, %v2099
    %v2120 = vpack.c.b16 %v2102, %v2101
    %v2121 = vpack.c.b16 %v2104, %v2103
    %v2122 = vpack.c.b16 %v2106, %v2105
    %2139 = vmatpush.bf16.msra.mxu0 %v2114
    %2140 = vmatpush.bf16.msra.mxu0 %v2113
    %2141 = vmatpush.bf16.msra.mxu0 %v2112
    %2142 = vmatpush.bf16.msra.mxu0 %v2111
    %2143 = vmatpush.bf16.msra.mxu0 %v2110
    %2144 = vmatpush.bf16.msra.mxu0 %v2109
    %2145 = vmatpush.bf16.msra.mxu0 %v2108
    %2146 = vmatpush.bf16.msra.mxu0 %v2107
    %2147 = vmatmul.bf16.gmra.mxu0 %v2003
    %v2148 = vpop.f32.mrf.mxu0
    %v2149 = vadd.f32 %v2041, %v2148
    %v2150 = vpop.f32.mrf.mxu0
    %v2151 = vadd.f32 %v2041, %v2150
    %2152 = vdwg.mxu0
    %2153 = vmatpush.bf16.msra.mxu0 %v2122
    %2154 = vmatpush.bf16.msra.mxu0 %v2121
    %2155 = vmatpush.bf16.msra.mxu0 %v2120
    %2156 = vmatpush.bf16.msra.mxu0 %v2119
    %2157 = vmatpush.bf16.msra.mxu0 %v2118
    %2158 = vmatpush.bf16.msra.mxu0 %v2117
    %2159 = vmatpush.bf16.msra.mxu0 %v2116
    %2160 = vmatpush.bf16.msra.mxu0 %v2115
    %2161 = vmatmul.bf16.gmra.mxu0 %v2004
    %v2162 = vpop.f32.mrf.mxu0
    %v2163 = vadd.f32 %v2149, %v2162
    %v2164 = vpop.f32.mrf.mxu0
    %v2165 = vadd.f32 %v2151, %v2164
    %2166 = vdwg.mxu0
    %v2167 = vadd.f32 %v1832, %v2163
    %v2168 = vadd.f32 %v1833, %v2165
    %s2169 = scalar_lea.vmem %s14, 1
    %v2170 = vld [vmem:[%s2169] sm:$0x1]
    %s2171 = scalar_lea.vmem %s15, 1
    %v2172 = vld [vmem:[%s2171] sm:$0x1]
    %2173 = vadd.xlane.f32.xlu0 %v2167
    %v2174 = vpop.xlane.xlu0 %2173
    %2175 = vadd.xlane.f32.xlu0 %v2168
    %v2176 = vpop.xlane.xlu0 %2175
    %v2177 = vmul.f32 %v2174, %v122
    %v2178 = vmul.f32 %v2176, %v122
    %v2179 = vsub.f32 %v2167, %v2177
    %v2180 = vsub.f32 %v2168, %v2178
    %v2181 = vmul.f32 %v2179, %v2179
    %v2182 = vmul.f32 %v2180, %v2180
    %2183 = vadd.xlane.f32.xlu0 %v2181
    %v2184 = vpop.xlane.xlu0 %2183
    %2185 = vadd.xlane.f32.xlu0 %v2182
    %v2186 = vpop.xlane.xlu0 %2185
    %v2187 = vmul.f32 %v2184, %v122
    %v2188 = vmul.f32 %v2186, %v122
    %v2189 = vadd.f32 %v2187, 1e-12
    %v2190 = vadd.f32 %v2188, 1e-12
    %v2191 = vrsqrt.pop %v2189
    %v2192 = vmul.f32 %v2191, %v2189
    %v2193 = vmul.f32 %v2192, %v2191
    %v2194 = vmul.f32 0.5, %v2193
    %v2195 = vsub.f32 1.5, %v2194
    %v2196 = vmul.f32 %v2191, %v2195
    %vm2197 = vweird.f32 %v2189
    %vm2198 = vweird.f32 %v2191
    %vm2199 = vmor %vm2197, %vm2198
    %v2200 = vsel %vm2199, %v2191, %v2196
    %v2201 = vrsqrt.pop %v2190
    %v2202 = vmul.f32 %v2201, %v2190
    %v2203 = vmul.f32 %v2202, %v2201
    %v2204 = vmul.f32 0.5, %v2203
    %v2205 = vsub.f32 1.5, %v2204
    %v2206 = vmul.f32 %v2201, %v2205
    %vm2207 = vweird.f32 %v2190
    %vm2208 = vweird.f32 %v2201
    %vm2209 = vmor %vm2207, %vm2208
    %v2210 = vsel %vm2209, %v2201, %v2206
    %v2211 = vmul.f32 %v2179, %v2200
    %v2212 = vmul.f32 %v2180, %v2210
    %v2214 = vperm.slane %v2170, 0
    %v2216 = vmul.f32 %v2211, %v2214
    %v2217 = vmul.f32 %v2212, %v2214
    %v2219 = vperm.slane %v2172, 0
    %v2221 = vadd.f32 %v2216, %v2219
    %v2222 = vadd.f32 %v2217, %v2219
    %v2223 = vpack.c.bf16 %v2221, %v2221
    %v2224 = vpack.c.bf16 %v2222, %v2222
    %v2225 = vld [vmem:[%s16] sm:$0xf]
    %v2226 = vld [vmem:[%s16 + $0x4] sm:$0xf]
    %v2227 = vld [vmem:[%s16 + $0x8] sm:$0xf]
    %v2228 = vld [vmem:[%s16 + $0xc] sm:$0xf]
    %v2229 = vld [vmem:[%s16 + $0x10] sm:$0xf]
    %v2230 = vld [vmem:[%s16 + $0x14] sm:$0xf]
    %v2231 = vld [vmem:[%s16 + $0x18] sm:$0xf]
    %v2232 = vld [vmem:[%s16 + $0x1c] sm:$0xf]
    %v2233 = vld [vmem:[%s16 + $0x20] sm:$0xf]
    %v2234 = vld [vmem:[%s16 + $0x24] sm:$0xf]
    %v2235 = vld [vmem:[%s16 + $0x28] sm:$0xf]
    %v2236 = vld [vmem:[%s16 + $0x2c] sm:$0xf]
    %v2237 = vld [vmem:[%s16 + $0x30] sm:$0xf]
    %v2238 = vld [vmem:[%s16 + $0x34] sm:$0xf]
    %v2239 = vld [vmem:[%s16 + $0x38] sm:$0xf]
    %v2240 = vld [vmem:[%s16 + $0x3c] sm:$0xf]
    %v2241 = vld [vmem:[%s17] sm:$0x1]
    %v2243 = vperm.slane %v2241, 0
    %v2247 = vunpack.c.l.b16 %v2223
    %v2248 = vunpack.c.l.b16 %v2224
    %v2249 = vrot.slane %v2248, 7
    %vm2250 = vcmask 1041409
    %v2251 = vsel %vm2250, %v2249, %v2247
    %v2252 = vpack.c.b16 %v2251, %v2251
    %v2270 = vunpack.c.l.b16 %v2225
    %v2271 = vunpack.c.l.b16 %v2226
    %v2272 = vunpack.c.l.b16 %v2227
    %v2273 = vunpack.c.l.b16 %v2228
    %v2274 = vunpack.c.l.b16 %v2229
    %v2275 = vunpack.c.l.b16 %v2230
    %v2276 = vunpack.c.l.b16 %v2231
    %v2277 = vunpack.c.l.b16 %v2232
    %v2278 = vunpack.c.l.b16 %v2233
    %v2279 = vunpack.c.l.b16 %v2234
    %v2280 = vunpack.c.l.b16 %v2235
    %v2281 = vunpack.c.l.b16 %v2236
    %v2282 = vunpack.c.l.b16 %v2237
    %v2283 = vunpack.c.l.b16 %v2238
    %v2284 = vunpack.c.l.b16 %v2239
    %v2285 = vunpack.c.l.b16 %v2240
    %v2286 = vpack.c.b16 %v2271, %v2270
    %v2287 = vpack.c.b16 %v2273, %v2272
    %v2288 = vpack.c.b16 %v2275, %v2274
    %v2289 = vpack.c.b16 %v2277, %v2276
    %v2290 = vpack.c.b16 %v2279, %v2278
    %v2291 = vpack.c.b16 %v2281, %v2280
    %v2292 = vpack.c.b16 %v2283, %v2282
    %v2293 = vpack.c.b16 %v2285, %v2284
    %2302 = vmatpush.bf16.msra.mxu0 %v2293
    %2303 = vmatpush.bf16.msra.mxu0 %v2292
    %2304 = vmatpush.bf16.msra.mxu0 %v2291
    %2305 = vmatpush.bf16.msra.mxu0 %v2290
    %2306 = vmatpush.bf16.msra.mxu0 %v2289
    %2307 = vmatpush.bf16.msra.mxu0 %v2288
    %2308 = vmatpush.bf16.msra.mxu0 %v2287
    %2309 = vmatpush.bf16.msra.mxu0 %v2286
    %2310 = vmatmul.bf16.gmra.mxu0 %v2252
    %v2311 = vpop.f32.mrf.mxu0
    %v2312 = vadd.f32 %v2243, %v2311
    %v2313 = vpop.f32.mrf.mxu0
    %2314 = vdwg.mxu0
    %v2315 = vtanh.pop %v2312
    %v2316 = vmul.f32 %v2315, %v2315
    %vm2317 = vcmask 1041408
    %v2318 = vsel %vm2317, %v2316, 0.0
    %2319 = vadd.xlane.f32.xlu0 %v2318
    %v2320 = vpop.xlane.xlu0 %2319
    %v2321 = vmax.f32 %v2320, 1e-24
    %v2322 = vrsqrt.pop %v2321
    %v2323 = vmul.f32 %v2322, %v2321
    %v2324 = vmul.f32 %v2323, %v2322
    %v2325 = vmul.f32 0.5, %v2324
    %v2326 = vsub.f32 1.5, %v2325
    %v2327 = vmul.f32 %v2322, %v2326
    %vm2328 = vweird.f32 %v2321
    %vm2329 = vweird.f32 %v2322
    %vm2330 = vmor %vm2328, %vm2329
    %v2331 = vsel %vm2330, %v2322, %v2327
    %v2332 = vmul.f32 %v2315, %v2331
    %2333 = vst [vmem:[#allocation8] sm:$0x3] %v2332
    // Predicated region
    $region86: #{multilingual_sentence_embedding.1} parent=1 // pred_check
      _
    $region87: #{multilingual_sentence_embedding.1} parent=1 // pred_check_branch
      %2335 = sbr.rel (0) target = $region89
    $region88: #{multilingual_sentence_embedding.1} parent=1 // pred_region
      %2337 = vsyncadd [#allocation4], 0
      %s2339 = sshll.u32 [#allocation8], 4
      %s2340 = int_to_ptr.vmem [resolvable:$true] %s2339
      %s2341 = sshll.u32 %s18, 4
      %s2342 = int_to_ptr.hbm [resolvable:$true] %s2341
      %2344 = dma.vmem_to_hbm [thread:$0]  %s2340, 32, %s2342, [#allocation4]
    $region89: #{multilingual_sentence_embedding.1} parent=1 // pred_fallthru
      _
    // Predicated region
    $region90: #{multilingual_sentence_embedding.1} parent=1 // pred_check
      _
    $region91: #{multilingual_sentence_embedding.1} parent=1 // pred_check_branch
      %2346 = sbr.rel (0) target = $region93
    $region92: #{multilingual_sentence_embedding.1} parent=1 // pred_region
      %2348 = dma.done [#allocation4], 32
    $region93: #{multilingual_sentence_embedding.1} parent=1 // pred_fallthru
      _
    %2349 = vsyncpa [#allocation3], 1
    %2350 = vsyncpa [#allocation6], 1
    %2351 = vsyncpa [#allocation4], 1

</llo_original>
